<compile_context>
chip_gen: v7x
topology: tpu7x:2x2x1
jax: 0.10.0
libtpu: 0.0.40
codegen_flags: <defaults>
</compile_context>

<pallas_src>
import functools

import jax
import jax.numpy as jnp
from jax import lax
from jax.experimental import pallas as pl
from jax.experimental.pallas import tpu as pltpu


def _mattention_kernel(x_ref, wqkv_r_ref, wqkv_f_ref, wproj_ref, bproj_ref, o_ref,
                       *, num_heads, scale):
    N, C = x_ref.shape
    hd = C // num_heads
    dims = (((1,), (1,)), ((), ()))          # contract last dim of both operands (== x @ W^T)

    x = x_ref[...].astype(jnp.bfloat16)      # (N, C) MXU operand; accumulate in f32

    # Two QKV projections (qkv_bias=False in the module -> no bias).
    qkv_r = lax.dot_general(x, wqkv_r_ref[...], dims,
                            preferred_element_type=jnp.float32)   # (N, 3C)
    qkv_g = lax.dot_general(x, wqkv_f_ref[...], dims,
                            preferred_element_type=jnp.float32)   # (N, 3C)

    # Per-head cross attention: q from the "r" branch, k/v from the "f"/"g" branch.
    # num_heads is tiny and static -> unrolled Python loop over static lane slices.
    head_outs = []
    for h in range(num_heads):
        qr = qkv_r[:, h * hd:(h + 1) * hd].astype(jnp.bfloat16)                 # (N, hd)
        kg = qkv_g[:, C + h * hd:C + (h + 1) * hd].astype(jnp.bfloat16)         # (N, hd)
        vg = qkv_g[:, 2 * C + h * hd:2 * C + (h + 1) * hd].astype(jnp.bfloat16) # (N, hd)

        logits = lax.dot_general(qr, kg, dims,
                                 preferred_element_type=jnp.float32) * scale    # (N, N)
        logits = logits - jnp.max(logits, axis=-1, keepdims=True)
        p = jnp.exp(logits)
        attn = p / jnp.sum(p, axis=-1, keepdims=True)
        # attn_drop = Dropout(0.0) -> identity
        head_outs.append(jnp.dot(attn.astype(jnp.bfloat16), vg,
                                 preferred_element_type=jnp.float32))           # (N, hd)

    # (attn @ v).transpose(1,2).reshape(B,N,C) == per-head outputs concatenated along C.
    ctx = jnp.concatenate(head_outs, axis=-1)                                   # (N, C)

    out = lax.dot_general(ctx.astype(jnp.bfloat16), wproj_ref[...], dims,
                          preferred_element_type=jnp.float32)
    out = out + bproj_ref[...]               # (1, C) bias broadcast over tokens
    # proj_drop = Dropout(0.0) -> identity
    o_ref[...] = out.astype(o_ref.dtype)


def mattention_forward(x, w_qkv_r, w_qkv_f, w_proj, b_proj, num_heads):
    """x: (B, C, H, W) f32; w_qkv_*: (3C, C); w_proj: (C, C); b_proj: (C,)."""
    B, C, H, W = x.shape
    N = H * W
    assert C % num_heads == 0
    head_dim = C // num_heads
    scale = head_dim ** -0.5

    # PyTorch does rgb.reshape(B, H*W, C) on the NCHW tensor: a raw memory-order
    # reshape (not a permute). Replicate it exactly in the wrapper (free in XLA).
    tokens = x.reshape(B, N, C)

    # Weights cast to bf16 once here (halves their HBM traffic, native MXU dtype).
    wr = w_qkv_r.astype(jnp.bfloat16)
    wf = w_qkv_f.astype(jnp.bfloat16)
    wp = w_proj.astype(jnp.bfloat16)
    bp = b_proj.reshape(1, C).astype(jnp.float32)

    kernel = functools.partial(_mattention_kernel, num_heads=num_heads, scale=scale)

    out = pl.pallas_call(
        kernel,
        out_shape=jax.ShapeDtypeStruct((B, N, C), x.dtype),
        grid_spec=pltpu.PrefetchScalarGridSpec(
            num_scalar_prefetch=0,
            grid=(B,),  # one batch element per step; "parallel" -> both TCs on v7x
            in_specs=[
                pl.BlockSpec((None, N, C), lambda b: (b, 0, 0)),   # tokens (squeezed batch)
                pl.BlockSpec((3 * C, C), lambda b: (0, 0)),        # W_qkv_r (shared)
                pl.BlockSpec((3 * C, C), lambda b: (0, 0)),        # W_qkv_f (shared)
                pl.BlockSpec((C, C), lambda b: (0, 0)),            # W_proj  (shared)
                pl.BlockSpec((1, C), lambda b: (0, 0)),            # b_proj  (shared)
            ],
            out_specs=pl.BlockSpec((None, N, C), lambda b: (b, 0, 0)),
        ),
        compiler_params=pltpu.CompilerParams(
            dimension_semantics=("parallel",)),
    )(tokens, wr, wf, wp, bp)

    # Final PyTorch reshape: (B, N, C) -> (B, C, sqrt(N), sqrt(N)), again a raw reshape.
    return out.reshape(B, C, H, W)
    # TODO(synk): if N or C scale to production sizes, tile N (queries) / 3C over a
    # reduction grid axis with a VMEM f32 accumulator instead of full-resident tiles.


def mattention_reference(x, w_qkv_r, w_qkv_f, w_proj, b_proj, num_heads,
                         mm_dtype=jnp.float32):
    """Pure-JAX reference mirroring the PyTorch forward.

    mm_dtype controls the matmul operand dtype (f32 = exact PyTorch math;
    bf16 = mirrors the kernel's MXU precision policy). Accumulation is f32.
    """
    B, C, H, W = x.shape
    N = H * W
    hd = C // num_heads
    scale = hd ** -0.5
    tok = x.reshape(B, N, C)

    def linear(t, w):
        return lax.dot_general(t.astype(mm_dtype), w.astype(mm_dtype),
                               (((t.ndim - 1,), (1,)), ((), ())),
                               preferred_element_type=jnp.float32)

    qkv_r = linear(tok, w_qkv_r).reshape(B, N, 3, num_heads, hd).transpose(2, 0, 3, 1, 4)
    qkv_g = linear(tok, w_qkv_f).reshape(B, N, 3, num_heads, hd).transpose(2, 0, 3, 1, 4)
    qr = qkv_r[0]
    kg, vg = qkv_g[1], qkv_g[2]

    logits = jnp.einsum('bhqd,bhkd->bhqk', qr.astype(mm_dtype), kg.astype(mm_dtype),
                        preferred_element_type=jnp.float32) * scale
    logits = logits - jnp.max(logits, axis=-1, keepdims=True)
    p = jnp.exp(logits)
    attn = p / jnp.sum(p, axis=-1, keepdims=True)
    ctx = jnp.einsum('bhqk,bhkd->bhqd', attn.astype(mm_dtype), vg.astype(mm_dtype),
                     preferred_element_type=jnp.float32)
    ctx = ctx.transpose(0, 2, 1, 3).reshape(B, N, C)
    out = linear(ctx, w_proj) + b_proj[None, None, :]
    return out.reshape(B, C, H, W)


if __name__ == "__main__":
    # dim = C = 128 keeps the lane dim full (unmasked stores); num_heads=4 -> head_dim=32;
    # H = W = 8 -> N = 64 tokens; B = 2.
    B, dim, num_heads, H, W = 2, 128, 4, 8, 8

    key = jax.random.PRNGKey(0)
    kx, kr, kf, kp, kb = jax.random.split(key, 5)
    x = jax.random.normal(kx, (B, dim, H, W), dtype=jnp.float32)
    w_qkv_r = jax.random.normal(kr, (3 * dim, dim), dtype=jnp.float32) / jnp.sqrt(dim)
    w_qkv_f = jax.random.normal(kf, (3 * dim, dim), dtype=jnp.float32) / jnp.sqrt(dim)
    w_proj = jax.random.normal(kp, (dim, dim), dtype=jnp.float32) / jnp.sqrt(dim)
    b_proj = jax.random.normal(kb, (dim,), dtype=jnp.float32) * 0.1

    out = mattention_forward(x, w_qkv_r, w_qkv_f, w_proj, b_proj, num_heads)
    out = jax.block_until_ready(out)
    assert out.shape == (B, dim, H, W)

    # Tight check against a reference that mirrors the kernel's precision policy
    # (bf16 MXU operands, f32 accumulation).
    ref_bf16 = mattention_reference(x, w_qkv_r, w_qkv_f, w_proj, b_proj, num_heads,
                                    mm_dtype=jnp.bfloat16)
    assert jnp.allclose(out, ref_bf16, atol=2e-3, rtol=2e-3), "mismatch vs bf16 reference"

    # Loose sanity check against the exact-f32 PyTorch-equivalent math
    # (difference is only bf16 operand rounding).
    ref_f32 = mattention_reference(x, w_qkv_r, w_qkv_f, w_proj, b_proj, num_heads,
                                   mm_dtype=jnp.float32)
    assert jnp.allclose(out, ref_f32, atol=1e-1, rtol=1e-1), "mismatch vs f32 reference"

    print("KERNEL_OK")
</pallas_src>

<mosaic_0001>
module attributes {stable_mosaic.version = 11 : i64} {
  func.func @_mattention_kernel(%arg0: i32, %arg1: memref<1x64x128xf32, #tpu.memory_space<vmem>>, %arg2: memref<384x128xbf16, #tpu.memory_space<vmem>>, %arg3: memref<384x128xbf16, #tpu.memory_space<vmem>>, %arg4: memref<128x128xbf16, #tpu.memory_space<vmem>>, %arg5: memref<1x128xf32, #tpu.memory_space<vmem>>, %arg6: memref<1x64x128xf32, #tpu.memory_space<vmem>>) attributes {dimension_semantics = [#tpu.dimension_semantics<parallel>], iteration_bounds = array<i64: 2>, scalar_prefetch = 0 : i64, scratch_operands = 0 : i64, tpu.core_type = #tpu.core_type<tc>, window_params = [{transform_indices = @transform_0, window_bounds = array<i64: 1, 64, 128>}, {pipeline_mode = #tpu.pipeline_mode<synchronous>, transform_indices = @transform_1, window_bounds = array<i64: 384, 128>}, {pipeline_mode = #tpu.pipeline_mode<synchronous>, transform_indices = @transform_2, window_bounds = array<i64: 384, 128>}, {pipeline_mode = #tpu.pipeline_mode<synchronous>, transform_indices = @transform_3, window_bounds = array<i64: 128, 128>}, {pipeline_mode = #tpu.pipeline_mode<synchronous>, transform_indices = @transform_4, window_bounds = array<i64: 1, 128>}, {transform_indices = @transform_5, window_bounds = array<i64: 1, 64, 128>}]} {
    %c0 = arith.constant 0 : index
    %c0_0 = arith.constant 0 : index
    %c0_1 = arith.constant 0 : index
    %0 = vector.load %arg1[%c0, %c0_0, %c0_1] : memref<1x64x128xf32, #tpu.memory_space<vmem>>, vector<1x64x128xf32>
    %1 = vector.shape_cast %0 : vector<1x64x128xf32> to vector<64x128xf32>
    %2 = arith.truncf %1 : vector<64x128xf32> to vector<64x128xbf16>
    %c0_2 = arith.constant 0 : index
    %c0_3 = arith.constant 0 : index
    %3 = vector.load %arg2[%c0_2, %c0_3] : memref<384x128xbf16, #tpu.memory_space<vmem>>, vector<384x128xbf16>
    %cst = arith.constant dense<0.000000e+00> : vector<64x384xf32>
    %4 = tpu.matmul %2, %3, %cst {dimension_numbers = #tpu.dot_dimension_numbers<[1], [1], [0], [0], [0, 0, 1, 0], [], []>} : vector<64x128xbf16>, vector<384x128xbf16>, vector<64x384xf32> -> vector<64x384xf32>
    %c0_4 = arith.constant 0 : index
    %c0_5 = arith.constant 0 : index
    %5 = vector.load %arg3[%c0_4, %c0_5] : memref<384x128xbf16, #tpu.memory_space<vmem>>, vector<384x128xbf16>
    %cst_6 = arith.constant dense<0.000000e+00> : vector<64x384xf32>
    %6 = tpu.matmul %2, %5, %cst_6 {dimension_numbers = #tpu.dot_dimension_numbers<[1], [1], [0], [0], [0, 0, 1, 0], [], []>} : vector<64x128xbf16>, vector<384x128xbf16>, vector<64x384xf32> -> vector<64x384xf32>
    %7 = vector.extract_strided_slice %4 {offsets = [0, 0], sizes = [64, 32], strides = [1, 1]} : vector<64x384xf32> to vector<64x32xf32>
    %8 = arith.truncf %7 : vector<64x32xf32> to vector<64x32xbf16>
    %9 = vector.extract_strided_slice %6 {offsets = [0, 128], sizes = [64, 32], strides = [1, 1]} : vector<64x384xf32> to vector<64x32xf32>
    %10 = arith.truncf %9 : vector<64x32xf32> to vector<64x32xbf16>
    %11 = vector.extract_strided_slice %6 {offsets = [0, 256], sizes = [64, 32], strides = [1, 1]} : vector<64x384xf32> to vector<64x32xf32>
    %12 = arith.truncf %11 : vector<64x32xf32> to vector<64x32xbf16>
    %cst_7 = arith.constant dense<0.000000e+00> : vector<64x64xf32>
    %13 = tpu.matmul %8, %10, %cst_7 {dimension_numbers = #tpu.dot_dimension_numbers<[1], [1], [0], [0], [0, 0, 1, 0], [], []>} : vector<64x32xbf16>, vector<64x32xbf16>, vector<64x64xf32> -> vector<64x64xf32>
    %cst_8 = arith.constant 0.176776692 : f32
    %14 = vector.broadcast %cst_8 : f32 to vector<64x64xf32>
    %15 = arith.mulf %13, %14 : vector<64x64xf32>
    %cst_9 = arith.constant dense<0xFF800000> : vector<64xf32>
    %16 = vector.multi_reduction <maximumf>, %15, %cst_9 [1] : vector<64x64xf32> to vector<64xf32>
    %17 = vector.shape_cast %16 : vector<64xf32> to vector<64x1xf32>
    %18 = vector.broadcast %17 : vector<64x1xf32> to vector<64x64xf32>
    %19 = arith.subf %15, %18 : vector<64x64xf32>
    %20 = math.exp %19 : vector<64x64xf32>
    %cst_10 = arith.constant dense<0.000000e+00> : vector<64xf32>
    %21 = vector.multi_reduction <add>, %20, %cst_10 [1] : vector<64x64xf32> to vector<64xf32>
    %22 = vector.shape_cast %21 : vector<64xf32> to vector<64x1xf32>
    %23 = vector.broadcast %22 : vector<64x1xf32> to vector<64x64xf32>
    %24 = arith.divf %20, %23 : vector<64x64xf32>
    %25 = arith.truncf %24 : vector<64x64xf32> to vector<64x64xbf16>
    %cst_11 = arith.constant dense<0.000000e+00> : vector<64x32xf32>
    %26 = tpu.matmul %25, %12, %cst_11 {dimension_numbers = #tpu.dot_dimension_numbers<[1], [0], [0], [1], [0, 0, 1, 1], [], []>} : vector<64x64xbf16>, vector<64x32xbf16>, vector<64x32xf32> -> vector<64x32xf32>
    %27 = vector.extract_strided_slice %4 {offsets = [0, 32], sizes = [64, 32], strides = [1, 1]} : vector<64x384xf32> to vector<64x32xf32>
    %28 = arith.truncf %27 : vector<64x32xf32> to vector<64x32xbf16>
    %29 = vector.extract_strided_slice %6 {offsets = [0, 160], sizes = [64, 32], strides = [1, 1]} : vector<64x384xf32> to vector<64x32xf32>
    %30 = arith.truncf %29 : vector<64x32xf32> to vector<64x32xbf16>
    %31 = vector.extract_strided_slice %6 {offsets = [0, 288], sizes = [64, 32], strides = [1, 1]} : vector<64x384xf32> to vector<64x32xf32>
    %32 = arith.truncf %31 : vector<64x32xf32> to vector<64x32xbf16>
    %cst_12 = arith.constant dense<0.000000e+00> : vector<64x64xf32>
    %33 = tpu.matmul %28, %30, %cst_12 {dimension_numbers = #tpu.dot_dimension_numbers<[1], [1], [0], [0], [0, 0, 1, 0], [], []>} : vector<64x32xbf16>, vector<64x32xbf16>, vector<64x64xf32> -> vector<64x64xf32>
    %cst_13 = arith.constant 0.176776692 : f32
    %34 = vector.broadcast %cst_13 : f32 to vector<64x64xf32>
    %35 = arith.mulf %33, %34 : vector<64x64xf32>
    %cst_14 = arith.constant dense<0xFF800000> : vector<64xf32>
    %36 = vector.multi_reduction <maximumf>, %35, %cst_14 [1] : vector<64x64xf32> to vector<64xf32>
    %37 = vector.shape_cast %36 : vector<64xf32> to vector<64x1xf32>
    %38 = vector.broadcast %37 : vector<64x1xf32> to vector<64x64xf32>
    %39 = arith.subf %35, %38 : vector<64x64xf32>
    %40 = math.exp %39 : vector<64x64xf32>
    %cst_15 = arith.constant dense<0.000000e+00> : vector<64xf32>
    %41 = vector.multi_reduction <add>, %40, %cst_15 [1] : vector<64x64xf32> to vector<64xf32>
    %42 = vector.shape_cast %41 : vector<64xf32> to vector<64x1xf32>
    %43 = vector.broadcast %42 : vector<64x1xf32> to vector<64x64xf32>
    %44 = arith.divf %40, %43 : vector<64x64xf32>
    %45 = arith.truncf %44 : vector<64x64xf32> to vector<64x64xbf16>
    %cst_16 = arith.constant dense<0.000000e+00> : vector<64x32xf32>
    %46 = tpu.matmul %45, %32, %cst_16 {dimension_numbers = #tpu.dot_dimension_numbers<[1], [0], [0], [1], [0, 0, 1, 1], [], []>} : vector<64x64xbf16>, vector<64x32xbf16>, vector<64x32xf32> -> vector<64x32xf32>
    %47 = vector.extract_strided_slice %4 {offsets = [0, 64], sizes = [64, 32], strides = [1, 1]} : vector<64x384xf32> to vector<64x32xf32>
    %48 = arith.truncf %47 : vector<64x32xf32> to vector<64x32xbf16>
    %49 = vector.extract_strided_slice %6 {offsets = [0, 192], sizes = [64, 32], strides = [1, 1]} : vector<64x384xf32> to vector<64x32xf32>
    %50 = arith.truncf %49 : vector<64x32xf32> to vector<64x32xbf16>
    %51 = vector.extract_strided_slice %6 {offsets = [0, 320], sizes = [64, 32], strides = [1, 1]} : vector<64x384xf32> to vector<64x32xf32>
    %52 = arith.truncf %51 : vector<64x32xf32> to vector<64x32xbf16>
    %cst_17 = arith.constant dense<0.000000e+00> : vector<64x64xf32>
    %53 = tpu.matmul %48, %50, %cst_17 {dimension_numbers = #tpu.dot_dimension_numbers<[1], [1], [0], [0], [0, 0, 1, 0], [], []>} : vector<64x32xbf16>, vector<64x32xbf16>, vector<64x64xf32> -> vector<64x64xf32>
    %cst_18 = arith.constant 0.176776692 : f32
    %54 = vector.broadcast %cst_18 : f32 to vector<64x64xf32>
    %55 = arith.mulf %53, %54 : vector<64x64xf32>
    %cst_19 = arith.constant dense<0xFF800000> : vector<64xf32>
    %56 = vector.multi_reduction <maximumf>, %55, %cst_19 [1] : vector<64x64xf32> to vector<64xf32>
    %57 = vector.shape_cast %56 : vector<64xf32> to vector<64x1xf32>
    %58 = vector.broadcast %57 : vector<64x1xf32> to vector<64x64xf32>
    %59 = arith.subf %55, %58 : vector<64x64xf32>
    %60 = math.exp %59 : vector<64x64xf32>
    %cst_20 = arith.constant dense<0.000000e+00> : vector<64xf32>
    %61 = vector.multi_reduction <add>, %60, %cst_20 [1] : vector<64x64xf32> to vector<64xf32>
    %62 = vector.shape_cast %61 : vector<64xf32> to vector<64x1xf32>
    %63 = vector.broadcast %62 : vector<64x1xf32> to vector<64x64xf32>
    %64 = arith.divf %60, %63 : vector<64x64xf32>
    %65 = arith.truncf %64 : vector<64x64xf32> to vector<64x64xbf16>
    %cst_21 = arith.constant dense<0.000000e+00> : vector<64x32xf32>
    %66 = tpu.matmul %65, %52, %cst_21 {dimension_numbers = #tpu.dot_dimension_numbers<[1], [0], [0], [1], [0, 0, 1, 1], [], []>} : vector<64x64xbf16>, vector<64x32xbf16>, vector<64x32xf32> -> vector<64x32xf32>
    %67 = vector.extract_strided_slice %4 {offsets = [0, 96], sizes = [64, 32], strides = [1, 1]} : vector<64x384xf32> to vector<64x32xf32>
    %68 = arith.truncf %67 : vector<64x32xf32> to vector<64x32xbf16>
    %69 = vector.extract_strided_slice %6 {offsets = [0, 224], sizes = [64, 32], strides = [1, 1]} : vector<64x384xf32> to vector<64x32xf32>
    %70 = arith.truncf %69 : vector<64x32xf32> to vector<64x32xbf16>
    %71 = vector.extract_strided_slice %6 {offsets = [0, 352], sizes = [64, 32], strides = [1, 1]} : vector<64x384xf32> to vector<64x32xf32>
    %72 = arith.truncf %71 : vector<64x32xf32> to vector<64x32xbf16>
    %cst_22 = arith.constant dense<0.000000e+00> : vector<64x64xf32>
    %73 = tpu.matmul %68, %70, %cst_22 {dimension_numbers = #tpu.dot_dimension_numbers<[1], [1], [0], [0], [0, 0, 1, 0], [], []>} : vector<64x32xbf16>, vector<64x32xbf16>, vector<64x64xf32> -> vector<64x64xf32>
    %cst_23 = arith.constant 0.176776692 : f32
    %74 = vector.broadcast %cst_23 : f32 to vector<64x64xf32>
    %75 = arith.mulf %73, %74 : vector<64x64xf32>
    %cst_24 = arith.constant dense<0xFF800000> : vector<64xf32>
    %76 = vector.multi_reduction <maximumf>, %75, %cst_24 [1] : vector<64x64xf32> to vector<64xf32>
    %77 = vector.shape_cast %76 : vector<64xf32> to vector<64x1xf32>
    %78 = vector.broadcast %77 : vector<64x1xf32> to vector<64x64xf32>
    %79 = arith.subf %75, %78 : vector<64x64xf32>
    %80 = math.exp %79 : vector<64x64xf32>
    %cst_25 = arith.constant dense<0.000000e+00> : vector<64xf32>
    %81 = vector.multi_reduction <add>, %80, %cst_25 [1] : vector<64x64xf32> to vector<64xf32>
    %82 = vector.shape_cast %81 : vector<64xf32> to vector<64x1xf32>
    %83 = vector.broadcast %82 : vector<64x1xf32> to vector<64x64xf32>
    %84 = arith.divf %80, %83 : vector<64x64xf32>
    %85 = arith.truncf %84 : vector<64x64xf32> to vector<64x64xbf16>
    %cst_26 = arith.constant dense<0.000000e+00> : vector<64x32xf32>
    %86 = tpu.matmul %85, %72, %cst_26 {dimension_numbers = #tpu.dot_dimension_numbers<[1], [0], [0], [1], [0, 0, 1, 1], [], []>} : vector<64x64xbf16>, vector<64x32xbf16>, vector<64x32xf32> -> vector<64x32xf32>
    %87 = tpu.concatenate %26, %46, %66, %86 in 1 : vector<64x32xf32>, vector<64x32xf32>, vector<64x32xf32>, vector<64x32xf32> -> vector<64x128xf32>
    %88 = arith.truncf %87 : vector<64x128xf32> to vector<64x128xbf16>
    %c0_27 = arith.constant 0 : index
    %c0_28 = arith.constant 0 : index
    %89 = vector.load %arg4[%c0_27, %c0_28] : memref<128x128xbf16, #tpu.memory_space<vmem>>, vector<128x128xbf16>
    %cst_29 = arith.constant dense<0.000000e+00> : vector<64x128xf32>
    %90 = tpu.matmul %88, %89, %cst_29 {dimension_numbers = #tpu.dot_dimension_numbers<[1], [1], [0], [0], [0, 0, 1, 0], [], []>} : vector<64x128xbf16>, vector<128x128xbf16>, vector<64x128xf32> -> vector<64x128xf32>
    %c0_30 = arith.constant 0 : index
    %c0_31 = arith.constant 0 : index
    %91 = vector.load %arg5[%c0_30, %c0_31] : memref<1x128xf32, #tpu.memory_space<vmem>>, vector<1x128xf32>
    %92 = vector.broadcast %91 : vector<1x128xf32> to vector<64x128xf32>
    %93 = arith.addf %90, %92 : vector<64x128xf32>
    %c0_32 = arith.constant 0 : index
    %c0_33 = arith.constant 0 : index
    %c0_34 = arith.constant 0 : index
    %94 = vector.load %arg6[%c0_32, %c0_33, %c0_34] : memref<1x64x128xf32, #tpu.memory_space<vmem>>, vector<1x64x128xf32>
    %95 = vector.shape_cast %94 : vector<1x64x128xf32> to vector<64x128xf32>
    %96 = vector.shape_cast %93 : vector<64x128xf32> to vector<1x64x128xf32>
    tpu.vector_store %arg6[%c0_32, %c0_33, %c0_34], %96 {strides = array<i32>} : memref<1x64x128xf32, #tpu.memory_space<vmem>>, vector<1x64x128xf32>,
    return
  }
  func.func @transform_0(%arg0: i32) -> (i32, i32, i32) {
    %c0_i32 = arith.constant 0 : i32
    %c0_i32_0 = arith.constant 0 : i32
    %c0_i32_1 = arith.constant 0 : i32
    return %arg0, %c0_i32, %c0_i32_0 : i32, i32, i32
  }
  func.func @transform_1(%arg0: i32) -> (i32, i32) {
    %c0_i32 = arith.constant 0 : i32
    %c0_i32_0 = arith.constant 0 : i32
    %c0_i32_1 = arith.constant 0 : i32
    return %c0_i32, %c0_i32_0 : i32, i32
  }
  func.func @transform_2(%arg0: i32) -> (i32, i32) {
    %c0_i32 = arith.constant 0 : i32
    %c0_i32_0 = arith.constant 0 : i32
    %c0_i32_1 = arith.constant 0 : i32
    return %c0_i32, %c0_i32_0 : i32, i32
  }
  func.func @transform_3(%arg0: i32) -> (i32, i32) {
    %c0_i32 = arith.constant 0 : i32
    %c0_i32_0 = arith.constant 0 : i32
    %c0_i32_1 = arith.constant 0 : i32
    return %c0_i32, %c0_i32_0 : i32, i32
  }
  func.func @transform_4(%arg0: i32) -> (i32, i32) {
    %c0_i32 = arith.constant 0 : i32
    %c0_i32_0 = arith.constant 0 : i32
    %c0_i32_1 = arith.constant 0 : i32
    return %c0_i32, %c0_i32_0 : i32, i32
  }
  func.func @transform_5(%arg0: i32) -> (i32, i32, i32) {
    %c0_i32 = arith.constant 0 : i32
    %c0_i32_0 = arith.constant 0 : i32
    %c0_i32_1 = arith.constant 0 : i32
    return %arg0, %c0_i32, %c0_i32_0 : i32, i32, i32
  }
}

</mosaic_0001>

<llo_original>
// kernel: tpu_custom_call.1
$region0: #{tpu_custom_call.1}
  #allocation0 [shape = 'u32[]', space=smem, size = 0x4, offset = 0x4, fixed_abs, tag = 'smem constant byte address 0x4 - core index']
  #allocation1 [shape = 'u32[144,128]{1,0:T(1,128)}', space=vmem, size = 0x12000, scoped, tag = 'internal scratch']
  %s0 = inlined_call_operand.hbm [shape: f32[2,64,128], index: 0, kind: input, shape index: {}]
  %s1 = inlined_call_operand.hbm [shape: bf16[384,128], index: 1, kind: input, shape index: {}]
  %s2 = inlined_call_operand.hbm [shape: bf16[384,128], index: 2, kind: input, shape index: {}]
  %s3 = inlined_call_operand.hbm [shape: bf16[128,128], index: 3, kind: input, shape index: {}]
  %s4 = inlined_call_operand.vmem [shape: f32[1,128], index: 4, kind: input, shape index: {}]
  %s5 = inlined_call_operand.hbm [shape: f32[2,64,128], index: 5, kind: output, shape index: {}]
  %s6 = sld [smem:[#allocation0]]
  $region69: #{tpu_custom_call.1} parent=0
    _
  %s8 = ssub.s32 1, %s6
  %s9 = scalar_select 0, %s8, %s6
  $region1: #{tpu_custom_call.1} parent=0
    #allocation2 [shape = 'u8[65536]{0}', space=vmem, size = 0x10000, scoped, tag = 'input window, operand 0']
    #allocation3 [shape = 's32[2]{0}', space=sflag, size = 0x8, scoped, tag = 'scoped memory for tpu_custom_call.1']
    #allocation4 [shape = 's32[2]{0}', space=sflag, size = 0x8, scoped, tag = 'scoped memory for tpu_custom_call.1']
    #allocation5 [shape = 'u8[98304]{0}', space=vmem, size = 0x18000, scoped, tag = 'input window, operand 1, single buffered']
    #allocation6 [shape = 's32[1]{0}', space=sflag, size = 0x4, scoped, tag = 'scoped memory for tpu_custom_call.1']
    #allocation7 [shape = 'u8[98304]{0}', space=vmem, size = 0x18000, scoped, tag = 'input window, operand 2, single buffered']
    #allocation8 [shape = 'u8[32768]{0}', space=vmem, size = 0x8000, scoped, tag = 'input window, operand 3, single buffered']
    #allocation9 [shape = 's32[1]{0}', space=sflag, size = 0x4, scoped, tag = 'scoped memory for tpu_custom_call.1']
    #allocation10 [shape = 'u8[65536]{0}', space=vmem, size = 0x10000, scoped, tag = 'output window, operand 0']
    %10 = vsyncpa [#allocation3], 0
    %s11 = scalar_lea.sflag [#allocation3], 1
    %12 = vsyncpa %s11, 0
    %13 = vsyncpa [#allocation6], 0
    %14 = vsyncpa [#allocation9], 0
    %15 = vsyncpa [#allocation4], 0
    %s16 = scalar_lea.sflag [#allocation4], 1
    %17 = vsyncpa %s16, 0
    loop: start=0, step=1, limit=4
    $region2: #{tpu_custom_call.1} parent=1 // loop_pre_header
      _
    $region3: #{tpu_custom_call.1} parent=1 // loop_header
      %s19 = sphi 0, %s23
      %p20 = scmp.ge.s32.totalorder %s19, 4
      %s29 = sphi 0, %s31
      %s32 = sphi 0, %s29
      %s33 = sphi 0, %s32
      %s49 = sphi 0, %s33
      %s53 = sphi 0, %s53
      %s55 = sphi 0, %s53
      %s56 = sphi 0, %s55
      %s70 = sphi 0, %s56
      %s74 = sphi 0, %s74
      %s76 = sphi 0, %s74
      %s77 = sphi 0, %s76
      %s91 = sphi 0, %s77
      %s95 = sphi 0, %s95
      %s97 = sphi 0, %s95
      %s98 = sphi 0, %s97
      %s112 = sphi 0, %s98
      %s116 = sphi 0, %s116
      %s118 = sphi 0, %s116
      %s119 = sphi 0, %s118
      %s133 = sphi 0, %s119
      %s139 = sphi 0, %s141
      %s142 = sphi 0, %s139
      %s143 = sphi 0, %s142
      %s159 = sphi 0, %s143
    $region4: #{tpu_custom_call.1} parent=1 // loop_header_branch
      %22 = sbr.rel (%p20) target = $region8
    $region5: #{tpu_custom_call.1} parent=1 // loop_body
      %s24 = ssub.s32 %s19, 1
      %s25 = ssub.s32 %s19, 2
      %s26 = sadd.s32 %s19, 1
      %s27 = ssub.s32 %s19, %s26
      %p28 = scmp.eq.s32.totalorder %s27, 0
      %s30 = sadd.s32 %s29, 1
      %s31 = scalar_select %p28, %s29, %s30
      %p34 = pneg %p28
      %p35 = scmp.eq.s32.totalorder %s19, 1
      %p36 = por %p34, %p35
      %p37 = scmp.ne.s32.totalorder %s29, %s32
      %p38 = scmp.eq.s32.totalorder %s19, 0
      %p39 = por %p37, %p38
      %p40 = scmp.ne.s32.totalorder %s29, %s32
      %p41 = scmp.eq.s32.totalorder %s24, 1
      %p42 = por %p40, %p41
      %p43 = scmp.ne.s32.totalorder %s32, %s33
      %p44 = scmp.eq.s32.totalorder %s24, 0
      %p45 = por %p43, %p44
      %p46 = scmp.ne.s32.totalorder %s32, %s33
      %p47 = scmp.eq.s32.totalorder %s25, 1
      %p48 = por %p46, %p47
      %p50 = scmp.ne.s32.totalorder %s33, %s49
      %p51 = scmp.eq.s32.totalorder %s25, 0
      %p52 = por %p50, %p51
      %s54 = sadd.s32 %s53, 1
      %p57 = scmp.eq.s32.totalorder %s19, 1
      %p58 = scmp.ne.s32.totalorder %s53, %s55
      %p59 = scmp.eq.s32.totalorder %s19, 0
      %p60 = por %p58, %p59
      %p61 = scmp.ne.s32.totalorder %s53, %s55
      %p62 = scmp.eq.s32.totalorder %s24, 1
      %p63 = por %p61, %p62
      %p64 = scmp.ne.s32.totalorder %s55, %s56
      %p65 = scmp.eq.s32.totalorder %s24, 0
      %p66 = por %p64, %p65
      %p67 = scmp.ne.s32.totalorder %s55, %s56
      %p68 = scmp.eq.s32.totalorder %s25, 1
      %p69 = por %p67, %p68
      %p71 = scmp.ne.s32.totalorder %s56, %s70
      %p72 = scmp.eq.s32.totalorder %s25, 0
      %p73 = por %p71, %p72
      %s75 = sadd.s32 %s74, 1
      %p78 = scmp.eq.s32.totalorder %s19, 1
      %p79 = scmp.ne.s32.totalorder %s74, %s76
      %p80 = scmp.eq.s32.totalorder %s19, 0
      %p81 = por %p79, %p80
      %p82 = scmp.ne.s32.totalorder %s74, %s76
      %p83 = scmp.eq.s32.totalorder %s24, 1
      %p84 = por %p82, %p83
      %p85 = scmp.ne.s32.totalorder %s76, %s77
      %p86 = scmp.eq.s32.totalorder %s24, 0
      %p87 = por %p85, %p86
      %p88 = scmp.ne.s32.totalorder %s76, %s77
      %p89 = scmp.eq.s32.totalorder %s25, 1
      %p90 = por %p88, %p89
      %p92 = scmp.ne.s32.totalorder %s77, %s91
      %p93 = scmp.eq.s32.totalorder %s25, 0
      %p94 = por %p92, %p93
      %s96 = sadd.s32 %s95, 1
      %p99 = scmp.eq.s32.totalorder %s19, 1
      %p100 = scmp.ne.s32.totalorder %s95, %s97
      %p101 = scmp.eq.s32.totalorder %s19, 0
      %p102 = por %p100, %p101
      %p103 = scmp.ne.s32.totalorder %s95, %s97
      %p104 = scmp.eq.s32.totalorder %s24, 1
      %p105 = por %p103, %p104
      %p106 = scmp.ne.s32.totalorder %s97, %s98
      %p107 = scmp.eq.s32.totalorder %s24, 0
      %p108 = por %p106, %p107
      %p109 = scmp.ne.s32.totalorder %s97, %s98
      %p110 = scmp.eq.s32.totalorder %s25, 1
      %p111 = por %p109, %p110
      %p113 = scmp.ne.s32.totalorder %s98, %s112
      %p114 = scmp.eq.s32.totalorder %s25, 0
      %p115 = por %p113, %p114
      %s117 = sadd.s32 %s116, 1
      %p120 = scmp.eq.s32.totalorder %s19, 1
      %p121 = scmp.ne.s32.totalorder %s116, %s118
      %p122 = scmp.eq.s32.totalorder %s19, 0
      %p123 = por %p121, %p122
      %p124 = scmp.ne.s32.totalorder %s116, %s118
      %p125 = scmp.eq.s32.totalorder %s24, 1
      %p126 = por %p124, %p125
      %p127 = scmp.ne.s32.totalorder %s118, %s119
      %p128 = scmp.eq.s32.totalorder %s24, 0
      %p129 = por %p127, %p128
      %p130 = scmp.ne.s32.totalorder %s118, %s119
      %p131 = scmp.eq.s32.totalorder %s25, 1
      %p132 = por %p130, %p131
      %p134 = scmp.ne.s32.totalorder %s119, %s133
      %p135 = scmp.eq.s32.totalorder %s25, 0
      %p136 = por %p134, %p135
      %s137 = ssub.s32 %s19, %s26
      %p138 = scmp.eq.s32.totalorder %s137, 0
      %s140 = sadd.s32 %s139, 1
      %s141 = scalar_select %p138, %s139, %s140
      %p144 = pneg %p138
      %p145 = scmp.eq.s32.totalorder %s19, 1
      %p146 = por %p144, %p145
      %p147 = scmp.ne.s32.totalorder %s139, %s142
      %p148 = scmp.eq.s32.totalorder %s19, 0
      %p149 = por %p147, %p148
      %p150 = scmp.ne.s32.totalorder %s139, %s142
      %p151 = scmp.eq.s32.totalorder %s24, 1
      %p152 = por %p150, %p151
      %p153 = scmp.ne.s32.totalorder %s142, %s143
      %p154 = scmp.eq.s32.totalorder %s24, 0
      %p155 = por %p153, %p154
      %p156 = scmp.ne.s32.totalorder %s142, %s143
      %p157 = scmp.eq.s32.totalorder %s25, 1
      %p158 = por %p156, %p157
      %p160 = scmp.ne.s32.totalorder %s143, %s159
      %p161 = scmp.eq.s32.totalorder %s25, 0
      %p162 = por %p160, %p161
      %p163 = scmp.le.s32.totalorder 1, %s19
      %p164 = scmp.lt.s32.totalorder %s19, 3
      %p165 = pnand %p163, %p164
      %p166 = pneg %p165
      // Predicated region
      $region9: #{tpu_custom_call.1} parent=5 // pred_check
        _
      $region10: #{tpu_custom_call.1} parent=5 // pred_check_branch
        %168 = sbr.rel (%p165) target = $region12
      $region11: #{tpu_custom_call.1} parent=5 // pred_region
        %s169 = ssub.s32 %s19, 1
        // Predicated region
        $region13: #{tpu_custom_call.1} parent=11 // pred_check
          %p170 = pneg %p66
        $region14: #{tpu_custom_call.1} parent=11 // pred_check_branch
          %172 = sbr.rel (%p170) target = $region16
        $region15: #{tpu_custom_call.1} parent=11 // pred_region
          %s174 = ssub.s32 3072, 3072
          %175 = vsyncadd [#allocation6], %s174
          %s176 = sshll.u32 [#allocation5], 4
          %s177 = int_to_ptr.vmem [resolvable:$true] %s176
          %182 = dma.hbm_to_vmem [thread:$0]  %s1, 3072, %s177, [#allocation6], 64, 64, 4
        $region16: #{tpu_custom_call.1} parent=11 // pred_fallthru
          _
        // Predicated region
        $region17: #{tpu_custom_call.1} parent=11 // pred_check
          %p183 = pneg %p87
        $region18: #{tpu_custom_call.1} parent=11 // pred_check_branch
          %185 = sbr.rel (%p183) target = $region20
        $region19: #{tpu_custom_call.1} parent=11 // pred_region
          %s187 = ssub.s32 3072, 3072
          %188 = vsyncadd [#allocation6], %s187
          %s189 = sshll.u32 [#allocation7], 4
          %s190 = int_to_ptr.vmem [resolvable:$true] %s189
          %195 = dma.hbm_to_vmem [thread:$0]  %s2, 3072, %s190, [#allocation6], 64, 64, 4
        $region20: #{tpu_custom_call.1} parent=11 // pred_fallthru
          _
        // Predicated region
        $region21: #{tpu_custom_call.1} parent=11 // pred_check
          %p196 = pneg %p108
        $region22: #{tpu_custom_call.1} parent=11 // pred_check_branch
          %198 = sbr.rel (%p196) target = $region24
        $region23: #{tpu_custom_call.1} parent=11 // pred_region
          %s200 = ssub.s32 1024, 1024
          %201 = vsyncadd [#allocation9], %s200
          %s202 = sshll.u32 [#allocation8], 4
          %s203 = int_to_ptr.vmem [resolvable:$true] %s202
          %208 = dma.hbm_to_vmem [thread:$0]  %s3, 1024, %s203, [#allocation9], 64, 64, 4
        $region24: #{tpu_custom_call.1} parent=11 // pred_fallthru
          _
        // Predicated region
        $region25: #{tpu_custom_call.1} parent=11 // pred_check
          %p209 = pneg %p129
        $region26: #{tpu_custom_call.1} parent=11 // pred_check_branch
          %211 = sbr.rel (%p209) target = $region28
        $region27: #{tpu_custom_call.1} parent=11 // pred_region
          _
        $region28: #{tpu_custom_call.1} parent=11 // pred_fallthru
          _
      $region12: #{tpu_custom_call.1} parent=5 // pred_fallthru
        _
      %p212 = scmp.lt.s32.totalorder %s19, 2
      // Predicated region
      $region29: #{tpu_custom_call.1} parent=5 // pred_check
        %p213 = pneg %p212
      $region30: #{tpu_custom_call.1} parent=5 // pred_check_branch
        %215 = sbr.rel (%p213) target = $region32
      $region31: #{tpu_custom_call.1} parent=5 // pred_region
        // Predicated region
        $region33: #{tpu_custom_call.1} parent=31 // pred_check
          %p216 = pneg %p39
        $region34: #{tpu_custom_call.1} parent=31 // pred_check_branch
          %218 = sbr.rel (%p216) target = $region36
        $region35: #{tpu_custom_call.1} parent=31 // pred_region
          %s219 = sand.u32 %s29, 1
          %s220 = scalar_lea.sflag [#allocation3], %s219
          %s221 = sand.u32 %s29, 1
          %s222 = smul.addr %s221, 64
          %s223 = scalar_lea.vmem [#allocation2], %s222
          %s225 = ssub.s32 1024, 1024
          %226 = vsyncadd %s220, %s225
          %s227 = smul.addr %s19, 8
          %s228 = smul.addr %s227, 128
          %s229 = scalar_lea.hbm %s0, %s228
          %s230 = sshll.u32 %s223, 4
          %s231 = int_to_ptr.vmem [resolvable:$true] %s230
          %236 = dma.hbm_to_vmem [thread:$0]  %s229, 1024, %s231, %s220, 128, 128, 8
        $region36: #{tpu_custom_call.1} parent=31 // pred_fallthru
          _
      $region32: #{tpu_custom_call.1} parent=5 // pred_fallthru
        _
      %p237 = scmp.le.s32.totalorder 1, %s19
      %p238 = scmp.lt.s32.totalorder %s19, 3
      %p239 = pnand %p237, %p238
      %p240 = pneg %p239
      // Predicated region
      $region37: #{tpu_custom_call.1} parent=5 // pred_check
        _
      $region38: #{tpu_custom_call.1} parent=5 // pred_check_branch
        %242 = sbr.rel (%p239) target = $region40
      $region39: #{tpu_custom_call.1} parent=5 // pred_region
        %s243 = ssub.s32 %s19, 1
        %s244 = sand.u32 %s32, 1
        %s245 = scalar_lea.sflag [#allocation3], %s244
        %s246 = sand.u32 %s32, 1
        %s247 = smul.addr %s246, 64
        %s248 = scalar_lea.vmem [#allocation2], %s247
        // Predicated region
        $region41: #{tpu_custom_call.1} parent=39 // pred_check
          %p249 = pneg %p45
        $region42: #{tpu_custom_call.1} parent=39 // pred_check_branch
          %251 = sbr.rel (%p249) target = $region44
        $region43: #{tpu_custom_call.1} parent=39 // pred_region
          %252 = dma.done %s245, 1024
        $region44: #{tpu_custom_call.1} parent=39 // pred_fallthru
          _
        // Predicated region
        $region45: #{tpu_custom_call.1} parent=39 // pred_check
          %p253 = pneg %p66
        $region46: #{tpu_custom_call.1} parent=39 // pred_check_branch
          %255 = sbr.rel (%p253) target = $region48
        $region47: #{tpu_custom_call.1} parent=39 // pred_region
          %256 = dma.done [#allocation6], 3072
        $region48: #{tpu_custom_call.1} parent=39 // pred_fallthru
          _
        // Predicated region
        $region49: #{tpu_custom_call.1} parent=39 // pred_check
          %p257 = pneg %p87
        $region50: #{tpu_custom_call.1} parent=39 // pred_check_branch
          %259 = sbr.rel (%p257) target = $region52
        $region51: #{tpu_custom_call.1} parent=39 // pred_region
          %260 = dma.done [#allocation6], 3072
        $region52: #{tpu_custom_call.1} parent=39 // pred_fallthru
          _
        // Predicated region
        $region53: #{tpu_custom_call.1} parent=39 // pred_check
          %p261 = pneg %p108
        $region54: #{tpu_custom_call.1} parent=39 // pred_check_branch
          %263 = sbr.rel (%p261) target = $region56
        $region55: #{tpu_custom_call.1} parent=39 // pred_region
          %264 = dma.done [#allocation9], 1024
        $region56: #{tpu_custom_call.1} parent=39 // pred_fallthru
          _
        %s265 = sand.u32 %s32, 1
        %s266 = scalar_lea.sflag [#allocation3], %s265
        %s267 = sand.u32 %s32, 1
        %s268 = smul.addr %s267, 64
        %s269 = scalar_lea.vmem [#allocation2], %s268
        %p270 = pneg %p45
        %p271 = pneg %p42
        %p272 = pneg %p66
        %p273 = pneg %p63
        %p274 = pneg %p87
        %p275 = pneg %p84
        %p276 = pneg %p108
        %p277 = pneg %p105
        %p278 = pneg %p129
        %p279 = pneg %p126
        %p280 = pneg %p155
        %p281 = pneg %p152
        %s282 = sand.u32 %s142, 1
        %s283 = scalar_lea.sflag [#allocation4], %s282
        %s284 = sand.u32 %s142, 1
        %s285 = smul.addr %s284, 64
        %s286 = scalar_lea.vmem [#allocation10], %s285
        %v288 = vld [vmem:[%s248] sm:$0xff]
        %v289 = vld [vmem:[%s248 + $0x8] sm:$0xff]
        %v290 = vld [vmem:[%s248 + $0x10] sm:$0xff]
        %v291 = vld [vmem:[%s248 + $0x18] sm:$0xff]
        %v292 = vld [vmem:[%s248 + $0x20] sm:$0xff]
        %v293 = vld [vmem:[%s248 + $0x28] sm:$0xff]
        %v294 = vld [vmem:[%s248 + $0x30] sm:$0xff]
        %v295 = vld [vmem:[%s248 + $0x38] sm:$0xff]
        %v296 = vpack.c.bf16 %v289, %v288
        %v297 = vpack.c.bf16 %v291, %v290
        %v298 = vpack.c.bf16 %v293, %v292
        %v299 = vpack.c.bf16 %v295, %v294
        %v300 = vld [vmem:[#allocation5] sm:$0xf]
        %v301 = vld [vmem:[#allocation5 + $0x4] sm:$0xf]
        %v302 = vld [vmem:[#allocation5 + $0x8] sm:$0xf]
        %v303 = vld [vmem:[#allocation5 + $0xc] sm:$0xf]
        %v304 = vld [vmem:[#allocation5 + $0x10] sm:$0xf]
        %v305 = vld [vmem:[#allocation5 + $0x14] sm:$0xf]
        %v306 = vld [vmem:[#allocation5 + $0x18] sm:$0xf]
        %v307 = vld [vmem:[#allocation5 + $0x1c] sm:$0xf]
        %v308 = vld [vmem:[#allocation5 + $0x20] sm:$0xf]
        %v309 = vld [vmem:[#allocation5 + $0x24] sm:$0xf]
        %v310 = vld [vmem:[#allocation5 + $0x28] sm:$0xf]
        %v311 = vld [vmem:[#allocation5 + $0x2c] sm:$0xf]
        %v312 = vld [vmem:[#allocation5 + $0x30] sm:$0xf]
        %v313 = vld [vmem:[#allocation5 + $0x34] sm:$0xf]
        %v314 = vld [vmem:[#allocation5 + $0x38] sm:$0xf]
        %v315 = vld [vmem:[#allocation5 + $0x3c] sm:$0xf]
        %v316 = vld [vmem:[#allocation5 + $0x40] sm:$0xf]
        %v317 = vld [vmem:[#allocation5 + $0x44] sm:$0xf]
        %v318 = vld [vmem:[#allocation5 + $0x48] sm:$0xf]
        %v319 = vld [vmem:[#allocation5 + $0x4c] sm:$0xf]
        %v320 = vld [vmem:[#allocation5 + $0x50] sm:$0xf]
        %v321 = vld [vmem:[#allocation5 + $0x54] sm:$0xf]
        %v322 = vld [vmem:[#allocation5 + $0x58] sm:$0xf]
        %v323 = vld [vmem:[#allocation5 + $0x5c] sm:$0xf]
        %v324 = vld [vmem:[#allocation5 + $0x60] sm:$0xf]
        %v325 = vld [vmem:[#allocation5 + $0x64] sm:$0xf]
        %v326 = vld [vmem:[#allocation5 + $0x68] sm:$0xf]
        %v327 = vld [vmem:[#allocation5 + $0x6c] sm:$0xf]
        %v328 = vld [vmem:[#allocation5 + $0x70] sm:$0xf]
        %v329 = vld [vmem:[#allocation5 + $0x74] sm:$0xf]
        %v330 = vld [vmem:[#allocation5 + $0x78] sm:$0xf]
        %v331 = vld [vmem:[#allocation5 + $0x7c] sm:$0xf]
        %v364 = vunpack.c.l.b16 %v300
        %v365 = vunpack.c.l.b16 %v301
        %v366 = vunpack.c.l.b16 %v302
        %v367 = vunpack.c.l.b16 %v303
        %v368 = vunpack.c.l.b16 %v304
        %v369 = vunpack.c.l.b16 %v305
        %v370 = vunpack.c.l.b16 %v306
        %v371 = vunpack.c.l.b16 %v307
        %v372 = vunpack.c.l.b16 %v308
        %v373 = vunpack.c.l.b16 %v309
        %v374 = vunpack.c.l.b16 %v310
        %v375 = vunpack.c.l.b16 %v311
        %v376 = vunpack.c.l.b16 %v312
        %v377 = vunpack.c.l.b16 %v313
        %v378 = vunpack.c.l.b16 %v314
        %v379 = vunpack.c.l.b16 %v315
        %v380 = vunpack.c.l.b16 %v316
        %v381 = vunpack.c.l.b16 %v317
        %v382 = vunpack.c.l.b16 %v318
        %v383 = vunpack.c.l.b16 %v319
        %v384 = vunpack.c.l.b16 %v320
        %v385 = vunpack.c.l.b16 %v321
        %v386 = vunpack.c.l.b16 %v322
        %v387 = vunpack.c.l.b16 %v323
        %v388 = vunpack.c.l.b16 %v324
        %v389 = vunpack.c.l.b16 %v325
        %v390 = vunpack.c.l.b16 %v326
        %v391 = vunpack.c.l.b16 %v327
        %v392 = vunpack.c.l.b16 %v328
        %v393 = vunpack.c.l.b16 %v329
        %v394 = vunpack.c.l.b16 %v330
        %v395 = vunpack.c.l.b16 %v331
        %v396 = vpack.c.b16 %v365, %v364
        %v397 = vpack.c.b16 %v367, %v366
        %v398 = vpack.c.b16 %v369, %v368
        %v399 = vpack.c.b16 %v371, %v370
        %v400 = vpack.c.b16 %v373, %v372
        %v401 = vpack.c.b16 %v375, %v374
        %v402 = vpack.c.b16 %v377, %v376
        %v403 = vpack.c.b16 %v379, %v378
        %v404 = vpack.c.b16 %v381, %v380
        %v405 = vpack.c.b16 %v383, %v382
        %v406 = vpack.c.b16 %v385, %v384
        %v407 = vpack.c.b16 %v387, %v386
        %v408 = vpack.c.b16 %v389, %v388
        %v409 = vpack.c.b16 %v391, %v390
        %v410 = vpack.c.b16 %v393, %v392
        %v411 = vpack.c.b16 %v395, %v394
        %428 = vmatprep.subr.bf16.mxu0 0
        %429 = vmatpush1.bf16.xpose.msra.mxu0 %v396
        %430 = vmatprep.subr.bf16.mxu0 0
        %431 = vmatpush1.bf16.xpose.msra.mxu0 %v397
        %432 = vmatprep.subr.bf16.mxu0 0
        %433 = vmatpush1.bf16.xpose.msra.mxu0 %v398
        %434 = vmatprep.subr.bf16.mxu0 0
        %435 = vmatpush1.bf16.xpose.msra.mxu0 %v399
        %436 = vmatprep.subr.bf16.mxu0 0
        %437 = vmatpush1.bf16.xpose.msra.mxu0 %v400
        %438 = vmatprep.subr.bf16.mxu0 0
        %439 = vmatpush1.bf16.xpose.msra.mxu0 %v401
        %440 = vmatprep.subr.bf16.mxu0 0
        %441 = vmatpush1.bf16.xpose.msra.mxu0 %v402
        %442 = vmatprep.subr.bf16.mxu0 0
        %443 = vmatpush1.bf16.xpose.msra.mxu0 %v403
        %444 = vmatprep.subr.bf16.mxu0 0
        %445 = vmatpush1.bf16.xpose.msra.mxu0 %v404
        %446 = vmatprep.subr.bf16.mxu0 0
        %447 = vmatpush1.bf16.xpose.msra.mxu0 %v405
        %448 = vmatprep.subr.bf16.mxu0 0
        %449 = vmatpush1.bf16.xpose.msra.mxu0 %v406
        %450 = vmatprep.subr.bf16.mxu0 0
        %451 = vmatpush1.bf16.xpose.msra.mxu0 %v407
        %452 = vmatprep.subr.bf16.mxu0 0
        %453 = vmatpush1.bf16.xpose.msra.mxu0 %v408
        %454 = vmatprep.subr.bf16.mxu0 0
        %455 = vmatpush1.bf16.xpose.msra.mxu0 %v409
        %456 = vmatprep.subr.bf16.mxu0 0
        %457 = vmatpush1.bf16.xpose.msra.mxu0 %v410
        %458 = vmatprep.subr.bf16.mxu0 0
        %459 = vmatpush1.bf16.xpose.msra.mxu0 %v411
        %460 = vmatprep.mubr.bf16.mxu0 0
        %461 = vmatmul.mubr.bf16.gmra.mrb[0].mxu0 %v296
        %v462 = vpop.f32.mrb[0].mxu0
        %v463 = vadd.f32 0.0, %v462
        %v464 = vpop.f32.mrb[0].mxu0
        %v465 = vpop.f32.mrb[0].mxu0
        %v466 = vadd.f32 0.0, %v465
        %v467 = vpop.f32.mrb[0].mxu0
        %468 = vmatprep.mubr.bf16.mxu0 0
        %469 = vmatmul.mubr.bf16.gmra.mrb[0].mxu0 %v297
        %v470 = vpop.f32.mrb[0].mxu0
        %v471 = vadd.f32 0.0, %v470
        %v472 = vpop.f32.mrb[0].mxu0
        %v473 = vpop.f32.mrb[0].mxu0
        %v474 = vadd.f32 0.0, %v473
        %v475 = vpop.f32.mrb[0].mxu0
        %476 = vmatprep.mubr.bf16.mxu0 0
        %477 = vmatmul.mubr.bf16.gmra.mrb[0].mxu0 %v298
        %v478 = vpop.f32.mrb[0].mxu0
        %v479 = vadd.f32 0.0, %v478
        %v480 = vpop.f32.mrb[0].mxu0
        %v481 = vpop.f32.mrb[0].mxu0
        %v482 = vadd.f32 0.0, %v481
        %v483 = vpop.f32.mrb[0].mxu0
        %484 = vmatprep.mubr.bf16.mxu0 0
        %485 = vmatmul.mubr.bf16.gmra.mrb[0].mxu0 %v299
        %v486 = vpop.f32.mrb[0].mxu0
        %v487 = vadd.f32 0.0, %v486
        %v488 = vpop.f32.mrb[0].mxu0
        %v489 = vpop.f32.mrb[0].mxu0
        %v490 = vadd.f32 0.0, %v489
        %v491 = vpop.f32.mrb[0].mxu0
        %492 = vdwg.mxu0
        %v493 = vld [vmem:[#allocation7] sm:$0xf]
        %v494 = vld [vmem:[#allocation7 + $0x4] sm:$0xf]
        %v495 = vld [vmem:[#allocation7 + $0x8] sm:$0xf]
        %v496 = vld [vmem:[#allocation7 + $0xc] sm:$0xf]
        %v497 = vld [vmem:[#allocation7 + $0x10] sm:$0xf]
        %v498 = vld [vmem:[#allocation7 + $0x14] sm:$0xf]
        %v499 = vld [vmem:[#allocation7 + $0x18] sm:$0xf]
        %v500 = vld [vmem:[#allocation7 + $0x1c] sm:$0xf]
        %v501 = vld [vmem:[#allocation7 + $0x20] sm:$0xf]
        %v502 = vld [vmem:[#allocation7 + $0x24] sm:$0xf]
        %v503 = vld [vmem:[#allocation7 + $0x28] sm:$0xf]
        %v504 = vld [vmem:[#allocation7 + $0x2c] sm:$0xf]
        %v505 = vld [vmem:[#allocation7 + $0x30] sm:$0xf]
        %v506 = vld [vmem:[#allocation7 + $0x34] sm:$0xf]
        %v507 = vld [vmem:[#allocation7 + $0x38] sm:$0xf]
        %v508 = vld [vmem:[#allocation7 + $0x3c] sm:$0xf]
        %v509 = vld [vmem:[#allocation7 + $0x40] sm:$0xf]
        %v510 = vld [vmem:[#allocation7 + $0x44] sm:$0xf]
        %v511 = vld [vmem:[#allocation7 + $0x48] sm:$0xf]
        %v512 = vld [vmem:[#allocation7 + $0x4c] sm:$0xf]
        %v513 = vld [vmem:[#allocation7 + $0x50] sm:$0xf]
        %v514 = vld [vmem:[#allocation7 + $0x54] sm:$0xf]
        %v515 = vld [vmem:[#allocation7 + $0x58] sm:$0xf]
        %v516 = vld [vmem:[#allocation7 + $0x5c] sm:$0xf]
        %v517 = vld [vmem:[#allocation7 + $0x60] sm:$0xf]
        %v518 = vld [vmem:[#allocation7 + $0x64] sm:$0xf]
        %v519 = vld [vmem:[#allocation7 + $0x68] sm:$0xf]
        %v520 = vld [vmem:[#allocation7 + $0x6c] sm:$0xf]
        %v521 = vld [vmem:[#allocation7 + $0x70] sm:$0xf]
        %v522 = vld [vmem:[#allocation7 + $0x74] sm:$0xf]
        %v523 = vld [vmem:[#allocation7 + $0x78] sm:$0xf]
        %v524 = vld [vmem:[#allocation7 + $0x7c] sm:$0xf]
        %v525 = vld [vmem:[#allocation7 + $0x80] sm:$0xf]
        %v526 = vld [vmem:[#allocation7 + $0x84] sm:$0xf]
        %v527 = vld [vmem:[#allocation7 + $0x88] sm:$0xf]
        %v528 = vld [vmem:[#allocation7 + $0x8c] sm:$0xf]
        %v529 = vld [vmem:[#allocation7 + $0x90] sm:$0xf]
        %v530 = vld [vmem:[#allocation7 + $0x94] sm:$0xf]
        %v531 = vld [vmem:[#allocation7 + $0x98] sm:$0xf]
        %v532 = vld [vmem:[#allocation7 + $0x9c] sm:$0xf]
        %v533 = vld [vmem:[#allocation7 + $0xa0] sm:$0xf]
        %v534 = vld [vmem:[#allocation7 + $0xa4] sm:$0xf]
        %v535 = vld [vmem:[#allocation7 + $0xa8] sm:$0xf]
        %v536 = vld [vmem:[#allocation7 + $0xac] sm:$0xf]
        %v537 = vld [vmem:[#allocation7 + $0xb0] sm:$0xf]
        %v538 = vld [vmem:[#allocation7 + $0xb4] sm:$0xf]
        %v539 = vld [vmem:[#allocation7 + $0xb8] sm:$0xf]
        %v540 = vld [vmem:[#allocation7 + $0xbc] sm:$0xf]
        %v589 = vunpack.c.l.b16 %v493
        %v590 = vunpack.c.l.b16 %v494
        %v591 = vunpack.c.l.b16 %v495
        %v592 = vunpack.c.l.b16 %v496
        %v593 = vunpack.c.l.b16 %v497
        %v594 = vunpack.c.l.b16 %v498
        %v595 = vunpack.c.l.b16 %v499
        %v596 = vunpack.c.l.b16 %v500
        %v597 = vunpack.c.l.b16 %v501
        %v598 = vunpack.c.l.b16 %v502
        %v599 = vunpack.c.l.b16 %v503
        %v600 = vunpack.c.l.b16 %v504
        %v601 = vunpack.c.l.b16 %v505
        %v602 = vunpack.c.l.b16 %v506
        %v603 = vunpack.c.l.b16 %v507
        %v604 = vunpack.c.l.b16 %v508
        %v605 = vunpack.c.l.b16 %v509
        %v606 = vunpack.c.l.b16 %v510
        %v607 = vunpack.c.l.b16 %v511
        %v608 = vunpack.c.l.b16 %v512
        %v609 = vunpack.c.l.b16 %v513
        %v610 = vunpack.c.l.b16 %v514
        %v611 = vunpack.c.l.b16 %v515
        %v612 = vunpack.c.l.b16 %v516
        %v613 = vunpack.c.l.b16 %v517
        %v614 = vunpack.c.l.b16 %v518
        %v615 = vunpack.c.l.b16 %v519
        %v616 = vunpack.c.l.b16 %v520
        %v617 = vunpack.c.l.b16 %v521
        %v618 = vunpack.c.l.b16 %v522
        %v619 = vunpack.c.l.b16 %v523
        %v620 = vunpack.c.l.b16 %v524
        %v621 = vunpack.c.l.b16 %v525
        %v622 = vunpack.c.l.b16 %v526
        %v623 = vunpack.c.l.b16 %v527
        %v624 = vunpack.c.l.b16 %v528
        %v625 = vunpack.c.l.b16 %v529
        %v626 = vunpack.c.l.b16 %v530
        %v627 = vunpack.c.l.b16 %v531
        %v628 = vunpack.c.l.b16 %v532
        %v629 = vunpack.c.l.b16 %v533
        %v630 = vunpack.c.l.b16 %v534
        %v631 = vunpack.c.l.b16 %v535
        %v632 = vunpack.c.l.b16 %v536
        %v633 = vunpack.c.l.b16 %v537
        %v634 = vunpack.c.l.b16 %v538
        %v635 = vunpack.c.l.b16 %v539
        %v636 = vunpack.c.l.b16 %v540
        %v637 = vpack.c.b16 %v590, %v589
        %v638 = vpack.c.b16 %v592, %v591
        %v639 = vpack.c.b16 %v594, %v593
        %v640 = vpack.c.b16 %v596, %v595
        %v641 = vpack.c.b16 %v598, %v597
        %v642 = vpack.c.b16 %v600, %v599
        %v643 = vpack.c.b16 %v602, %v601
        %v644 = vpack.c.b16 %v604, %v603
        %v645 = vpack.c.b16 %v606, %v605
        %v646 = vpack.c.b16 %v608, %v607
        %v647 = vpack.c.b16 %v610, %v609
        %v648 = vpack.c.b16 %v612, %v611
        %v649 = vpack.c.b16 %v614, %v613
        %v650 = vpack.c.b16 %v616, %v615
        %v651 = vpack.c.b16 %v618, %v617
        %v652 = vpack.c.b16 %v620, %v619
        %v653 = vpack.c.b16 %v622, %v621
        %v654 = vpack.c.b16 %v624, %v623
        %v655 = vpack.c.b16 %v626, %v625
        %v656 = vpack.c.b16 %v628, %v627
        %v657 = vpack.c.b16 %v630, %v629
        %v658 = vpack.c.b16 %v632, %v631
        %v659 = vpack.c.b16 %v634, %v633
        %v660 = vpack.c.b16 %v636, %v635
        %685 = vmatprep.subr.bf16.mxu0 0
        %686 = vmatpush1.bf16.xpose.msra.mxu0 %v637
        %687 = vmatprep.subr.bf16.mxu0 0
        %688 = vmatpush1.bf16.xpose.msra.mxu0 %v638
        %689 = vmatprep.subr.bf16.mxu0 0
        %690 = vmatpush1.bf16.xpose.msra.mxu0 %v639
        %691 = vmatprep.subr.bf16.mxu0 0
        %692 = vmatpush1.bf16.xpose.msra.mxu0 %v640
        %693 = vmatprep.subr.bf16.mxu0 0
        %694 = vmatpush1.bf16.xpose.msra.mxu0 %v641
        %695 = vmatprep.subr.bf16.mxu0 0
        %696 = vmatpush1.bf16.xpose.msra.mxu0 %v642
        %697 = vmatprep.subr.bf16.mxu0 0
        %698 = vmatpush1.bf16.xpose.msra.mxu0 %v643
        %699 = vmatprep.subr.bf16.mxu0 0
        %700 = vmatpush1.bf16.xpose.msra.mxu0 %v644
        %701 = vmatprep.subr.bf16.mxu0 0
        %702 = vmatpush1.bf16.xpose.msra.mxu0 %v645
        %703 = vmatprep.subr.bf16.mxu0 0
        %704 = vmatpush1.bf16.xpose.msra.mxu0 %v646
        %705 = vmatprep.subr.bf16.mxu0 0
        %706 = vmatpush1.bf16.xpose.msra.mxu0 %v647
        %707 = vmatprep.subr.bf16.mxu0 0
        %708 = vmatpush1.bf16.xpose.msra.mxu0 %v648
        %709 = vmatprep.subr.bf16.mxu0 0
        %710 = vmatpush1.bf16.xpose.msra.mxu0 %v649
        %711 = vmatprep.subr.bf16.mxu0 0
        %712 = vmatpush1.bf16.xpose.msra.mxu0 %v650
        %713 = vmatprep.subr.bf16.mxu0 0
        %714 = vmatpush1.bf16.xpose.msra.mxu0 %v651
        %715 = vmatprep.subr.bf16.mxu0 0
        %716 = vmatpush1.bf16.xpose.msra.mxu0 %v652
        %717 = vmatprep.mubr.bf16.mxu0 0
        %718 = vmatmul.mubr.bf16.gmra.mrb[0].mxu0 %v296
        %v719 = vpop.f32.mrb[0].mxu0
        %v720 = vpop.f32.mrb[0].mxu0
        %v721 = vadd.f32 0.0, %v720
        %v722 = vpop.f32.mrb[0].mxu0
        %v723 = vpop.f32.mrb[0].mxu0
        %v724 = vadd.f32 0.0, %v723
        %725 = vmatprep.mubr.bf16.mxu0 0
        %726 = vmatmul.mubr.bf16.gmra.mrb[0].mxu0 %v297
        %v727 = vpop.f32.mrb[0].mxu0
        %v728 = vpop.f32.mrb[0].mxu0
        %v729 = vadd.f32 0.0, %v728
        %v730 = vpop.f32.mrb[0].mxu0
        %v731 = vpop.f32.mrb[0].mxu0
        %v732 = vadd.f32 0.0, %v731
        %733 = vmatprep.mubr.bf16.mxu0 0
        %734 = vmatmul.mubr.bf16.gmra.mrb[0].mxu0 %v298
        %v735 = vpop.f32.mrb[0].mxu0
        %v736 = vpop.f32.mrb[0].mxu0
        %v737 = vadd.f32 0.0, %v736
        %v738 = vpop.f32.mrb[0].mxu0
        %v739 = vpop.f32.mrb[0].mxu0
        %v740 = vadd.f32 0.0, %v739
        %741 = vmatprep.mubr.bf16.mxu0 0
        %742 = vmatmul.mubr.bf16.gmra.mrb[0].mxu0 %v299
        %v743 = vpop.f32.mrb[0].mxu0
        %v744 = vpop.f32.mrb[0].mxu0
        %v745 = vadd.f32 0.0, %v744
        %v746 = vpop.f32.mrb[0].mxu0
        %v747 = vpop.f32.mrb[0].mxu0
        %v748 = vadd.f32 0.0, %v747
        %749 = vdwg.mxu0
        %750 = vmatprep.subr.bf16.mxu0 0
        %751 = vmatpush1.bf16.xpose.msra.mxu0 %v653
        %752 = vmatprep.subr.bf16.mxu0 0
        %753 = vmatpush1.bf16.xpose.msra.mxu0 %v654
        %754 = vmatprep.subr.bf16.mxu0 0
        %755 = vmatpush1.bf16.xpose.msra.mxu0 %v655
        %756 = vmatprep.subr.bf16.mxu0 0
        %757 = vmatpush1.bf16.xpose.msra.mxu0 %v656
        %758 = vmatprep.subr.bf16.mxu0 0
        %759 = vmatpush1.bf16.xpose.msra.mxu0 %v657
        %760 = vmatprep.subr.bf16.mxu0 0
        %761 = vmatpush1.bf16.xpose.msra.mxu0 %v658
        %762 = vmatprep.subr.bf16.mxu0 0
        %763 = vmatpush1.bf16.xpose.msra.mxu0 %v659
        %764 = vmatprep.subr.bf16.mxu0 0
        %765 = vmatpush1.bf16.xpose.msra.mxu0 %v660
        %766 = vmatprep.subr.bf16.mxu0 0
        %767 = vmatpush1.bf16.xpose.msra.mxu0 0
        %768 = vmatprep.subr.bf16.mxu0 0
        %769 = vmatpush1.bf16.xpose.msra.mxu0 0
        %770 = vmatprep.subr.bf16.mxu0 0
        %771 = vmatpush1.bf16.xpose.msra.mxu0 0
        %772 = vmatprep.subr.bf16.mxu0 0
        %773 = vmatpush1.bf16.xpose.msra.mxu0 0
        %774 = vmatprep.subr.bf16.mxu0 0
        %775 = vmatpush1.bf16.xpose.msra.mxu0 0
        %776 = vmatprep.subr.bf16.mxu0 0
        %777 = vmatpush1.bf16.xpose.msra.mxu0 0
        %778 = vmatprep.subr.bf16.mxu0 0
        %779 = vmatpush1.bf16.xpose.msra.mxu0 0
        %780 = vmatprep.subr.bf16.mxu0 0
        %781 = vmatpush1.bf16.xpose.msra.mxu0 0
        %782 = vmatprep.mubr.bf16.mxu0 0
        %783 = vmatmul.mubr.bf16.gmra.mrb[0].mxu0 %v296
        %v784 = vpop.f32.mrb[0].mxu0
        %v785 = vadd.f32 0.0, %v784
        %v786 = vpop.f32.mrb[0].mxu0
        %v787 = vpop.f32.mrb[0].mxu0
        %v788 = vadd.f32 0.0, %v787
        %v789 = vpop.f32.mrb[0].mxu0
        %790 = vmatprep.mubr.bf16.mxu0 0
        %791 = vmatmul.mubr.bf16.gmra.mrb[0].mxu0 %v297
        %v792 = vpop.f32.mrb[0].mxu0
        %v793 = vadd.f32 0.0, %v792
        %v794 = vpop.f32.mrb[0].mxu0
        %v795 = vpop.f32.mrb[0].mxu0
        %v796 = vadd.f32 0.0, %v795
        %v797 = vpop.f32.mrb[0].mxu0
        %798 = vmatprep.mubr.bf16.mxu0 0
        %799 = vmatmul.mubr.bf16.gmra.mrb[0].mxu0 %v298
        %v800 = vpop.f32.mrb[0].mxu0
        %v801 = vadd.f32 0.0, %v800
        %v802 = vpop.f32.mrb[0].mxu0
        %v803 = vpop.f32.mrb[0].mxu0
        %v804 = vadd.f32 0.0, %v803
        %v805 = vpop.f32.mrb[0].mxu0
        %806 = vmatprep.mubr.bf16.mxu0 0
        %807 = vmatmul.mubr.bf16.gmra.mrb[0].mxu0 %v299
        %v808 = vpop.f32.mrb[0].mxu0
        %v809 = vadd.f32 0.0, %v808
        %v810 = vpop.f32.mrb[0].mxu0
        %v811 = vpop.f32.mrb[0].mxu0
        %v812 = vadd.f32 0.0, %v811
        %v813 = vpop.f32.mrb[0].mxu0
        %814 = vdwg.mxu0
        %v815 = vpack.c.bf16 %v466, %v463
        %v816 = vpack.c.bf16 %v474, %v471
        %v817 = vpack.c.bf16 %v482, %v479
        %v818 = vpack.c.bf16 %v490, %v487
        %v819 = vpack.c.bf16 %v724, %v721
        %v820 = vpack.c.bf16 %v732, %v729
        %v821 = vpack.c.bf16 %v740, %v737
        %v822 = vpack.c.bf16 %v748, %v745
        %v823 = vpack.c.bf16 %v788, %v785
        %v824 = vpack.c.bf16 %v796, %v793
        %v825 = vpack.c.bf16 %v804, %v801
        %v826 = vpack.c.bf16 %v812, %v809
        %vm827 = vcmask 261120
        %v829 = vsel %vm827, %v815, 0
        %v832 = vsel %vm827, %v816, 0
        %v835 = vsel %vm827, %v817, 0
        %v838 = vsel %vm827, %v818, 0
        %v841 = vsel %vm827, %v819, 0
        %v844 = vsel %vm827, %v820, 0
        %v847 = vsel %vm827, %v821, 0
        %v850 = vsel %vm827, %v822, 0
        %852 = vmatprep.subr.bf16.mxu0 0
        %853 = vmatpush1.bf16.xpose.msra.mxu0 %v841
        %854 = vmatprep.subr.bf16.mxu0 0
        %855 = vmatpush1.bf16.xpose.msra.mxu0 %v844
        %856 = vmatprep.subr.bf16.mxu0 0
        %857 = vmatpush1.bf16.xpose.msra.mxu0 %v847
        %858 = vmatprep.subr.bf16.mxu0 0
        %859 = vmatpush1.bf16.xpose.msra.mxu0 %v850
        %860 = vmatprep.subr.bf16.mxu0 0
        %861 = vmatpush1.bf16.xpose.msra.mxu0 0
        %862 = vmatprep.subr.bf16.mxu0 0
        %863 = vmatpush1.bf16.xpose.msra.mxu0 0
        %864 = vmatprep.subr.bf16.mxu0 0
        %865 = vmatpush1.bf16.xpose.msra.mxu0 0
        %866 = vmatprep.subr.bf16.mxu0 0
        %867 = vmatpush1.bf16.xpose.msra.mxu0 0
        %868 = vmatprep.subr.bf16.mxu0 0
        %869 = vmatpush1.bf16.xpose.msra.mxu0 0
        %870 = vmatprep.subr.bf16.mxu0 0
        %871 = vmatpush1.bf16.xpose.msra.mxu0 0
        %872 = vmatprep.subr.bf16.mxu0 0
        %873 = vmatpush1.bf16.xpose.msra.mxu0 0
        %874 = vmatprep.subr.bf16.mxu0 0
        %875 = vmatpush1.bf16.xpose.msra.mxu0 0
        %876 = vmatprep.subr.bf16.mxu0 0
        %877 = vmatpush1.bf16.xpose.msra.mxu0 0
        %878 = vmatprep.subr.bf16.mxu0 0
        %879 = vmatpush1.bf16.xpose.msra.mxu0 0
        %880 = vmatprep.subr.bf16.mxu0 0
        %881 = vmatpush1.bf16.xpose.msra.mxu0 0
        %882 = vmatprep.subr.bf16.mxu0 0
        %883 = vmatpush1.bf16.xpose.msra.mxu0 0
        %884 = vmatprep.mubr.bf16.mxu0 0
        %885 = vmatmul.mubr.bf16.gmra.mrb[0].mxu0 %v829
        %v886 = vpop.f32.mrb[0].mxu0
        %v887 = vadd.f32 0.0, %v886
        %v888 = vpop.f32.mrb[0].mxu0
        %v889 = vpop.f32.mrb[0].mxu0
        %v890 = vadd.f32 0.0, %v889
        %v891 = vpop.f32.mrb[0].mxu0
        %892 = vmatprep.mubr.bf16.mxu0 0
        %893 = vmatmul.mubr.bf16.gmra.mrb[0].mxu0 %v832
        %v894 = vpop.f32.mrb[0].mxu0
        %v895 = vadd.f32 0.0, %v894
        %v896 = vpop.f32.mrb[0].mxu0
        %v897 = vpop.f32.mrb[0].mxu0
        %v898 = vadd.f32 0.0, %v897
        %v899 = vpop.f32.mrb[0].mxu0
        %900 = vmatprep.mubr.bf16.mxu0 0
        %901 = vmatmul.mubr.bf16.gmra.mrb[0].mxu0 %v835
        %v902 = vpop.f32.mrb[0].mxu0
        %v903 = vadd.f32 0.0, %v902
        %v904 = vpop.f32.mrb[0].mxu0
        %v905 = vpop.f32.mrb[0].mxu0
        %v906 = vadd.f32 0.0, %v905
        %v907 = vpop.f32.mrb[0].mxu0
        %908 = vmatprep.mubr.bf16.mxu0 0
        %909 = vmatmul.mubr.bf16.gmra.mrb[0].mxu0 %v838
        %v910 = vpop.f32.mrb[0].mxu0
        %v911 = vadd.f32 0.0, %v910
        %v912 = vpop.f32.mrb[0].mxu0
        %v913 = vpop.f32.mrb[0].mxu0
        %v914 = vadd.f32 0.0, %v913
        %v915 = vpop.f32.mrb[0].mxu0
        %916 = vdwg.mxu0
        %v917 = vmul.f32 %v887, 0.17677669
        %v918 = vmul.f32 %v890, 0.17677669
        %v919 = vmul.f32 %v895, 0.17677669
        %v920 = vmul.f32 %v898, 0.17677669
        %v921 = vmul.f32 %v903, 0.17677669
        %v922 = vmul.f32 %v906, 0.17677669
        %v923 = vmul.f32 %v911, 0.17677669
        %v924 = vmul.f32 %v914, 0.17677669
        %vm925 = vcmask 523264
        %v926 = vsel %vm925, %v917, -inf
        %927 = vmax.xlane.f32.xlu0 %v926
        %v928 = vpop.xlane.xlu0 %927
        %v929 = vsel %vm925, %v918, -inf
        %930 = vmax.xlane.f32.xlu0 %v929
        %v931 = vpop.xlane.xlu0 %930
        %v932 = vsel %vm925, %v919, -inf
        %933 = vmax.xlane.f32.xlu0 %v932
        %v934 = vpop.xlane.xlu0 %933
        %v935 = vsel %vm925, %v920, -inf
        %936 = vmax.xlane.f32.xlu0 %v935
        %v937 = vpop.xlane.xlu0 %936
        %v938 = vsel %vm925, %v921, -inf
        %939 = vmax.xlane.f32.xlu0 %v938
        %v940 = vpop.xlane.xlu0 %939
        %v941 = vsel %vm925, %v922, -inf
        %942 = vmax.xlane.f32.xlu0 %v941
        %v943 = vpop.xlane.xlu0 %942
        %v944 = vsel %vm925, %v923, -inf
        %945 = vmax.xlane.f32.xlu0 %v944
        %v946 = vpop.xlane.xlu0 %945
        %v947 = vsel %vm925, %v924, -inf
        %948 = vmax.xlane.f32.xlu0 %v947
        %v949 = vpop.xlane.xlu0 %948
        %v950 = vsub.f32 %v917, %v928
        %v951 = vsub.f32 %v918, %v931
        %v952 = vsub.f32 %v919, %v934
        %v953 = vsub.f32 %v920, %v937
        %v954 = vsub.f32 %v921, %v940
        %v955 = vsub.f32 %v922, %v943
        %v956 = vsub.f32 %v923, %v946
        %v957 = vsub.f32 %v924, %v949
        %v958 = vmul.f32 %v950, 1.442695
        %v959 = vpow.pop %v958
        %v960 = vmul.f32 %v951, 1.442695
        %v961 = vpow.pop %v960
        %v962 = vmul.f32 %v952, 1.442695
        %v963 = vpow.pop %v962
        %v964 = vmul.f32 %v953, 1.442695
        %v965 = vpow.pop %v964
        %v966 = vmul.f32 %v954, 1.442695
        %v967 = vpow.pop %v966
        %v968 = vmul.f32 %v955, 1.442695
        %v969 = vpow.pop %v968
        %v970 = vmul.f32 %v956, 1.442695
        %v971 = vpow.pop %v970
        %v972 = vmul.f32 %v957, 1.442695
        %v973 = vpow.pop %v972
        %v974 = vsel %vm925, %v959, 0.0
        %975 = vadd.xlane.f32.xlu0 %v974
        %v976 = vpop.xlane.xlu0 %975
        %v977 = vsel %vm925, %v961, 0.0
        %978 = vadd.xlane.f32.xlu0 %v977
        %v979 = vpop.xlane.xlu0 %978
        %v980 = vsel %vm925, %v963, 0.0
        %981 = vadd.xlane.f32.xlu0 %v980
        %v982 = vpop.xlane.xlu0 %981
        %v983 = vsel %vm925, %v965, 0.0
        %984 = vadd.xlane.f32.xlu0 %v983
        %v985 = vpop.xlane.xlu0 %984
        %v986 = vsel %vm925, %v967, 0.0
        %987 = vadd.xlane.f32.xlu0 %v986
        %v988 = vpop.xlane.xlu0 %987
        %v989 = vsel %vm925, %v969, 0.0
        %990 = vadd.xlane.f32.xlu0 %v989
        %v991 = vpop.xlane.xlu0 %990
        %v992 = vsel %vm925, %v971, 0.0
        %993 = vadd.xlane.f32.xlu0 %v992
        %v994 = vpop.xlane.xlu0 %993
        %v995 = vsel %vm925, %v973, 0.0
        %996 = vadd.xlane.f32.xlu0 %v995
        %v997 = vpop.xlane.xlu0 %996
        %v998 = vrcp.pop %v976
        %v999 = vmul.f32 %v959, %v998
        %v1000 = vrcp.pop %v979
        %v1001 = vmul.f32 %v961, %v1000
        %v1002 = vrcp.pop %v982
        %v1003 = vmul.f32 %v963, %v1002
        %v1004 = vrcp.pop %v985
        %v1005 = vmul.f32 %v965, %v1004
        %v1006 = vrcp.pop %v988
        %v1007 = vmul.f32 %v967, %v1006
        %v1008 = vrcp.pop %v991
        %v1009 = vmul.f32 %v969, %v1008
        %v1010 = vrcp.pop %v994
        %v1011 = vmul.f32 %v971, %v1010
        %v1012 = vrcp.pop %v997
        %v1013 = vmul.f32 %v973, %v1012
        %v1014 = vpack.c.bf16 %v1001, %v999
        %v1015 = vpack.c.bf16 %v1005, %v1003
        %v1016 = vpack.c.bf16 %v1009, %v1007
        %v1017 = vpack.c.bf16 %v1013, %v1011
        %v1019 = vsel %vm925, %v1014, 0
        %v1022 = vsel %vm925, %v1015, 0
        %v1025 = vsel %vm925, %v1016, 0
        %v1028 = vsel %vm925, %v1017, 0
        %1030 = vmatprep.subr.bf16.mxu0 0
        %1031 = vmatpush1.bf16.msra.mxu0 %v823
        %1032 = vmatprep.subr.bf16.mxu0 0
        %1033 = vmatpush1.bf16.msra.mxu0 %v824
        %1034 = vmatprep.subr.bf16.mxu0 0
        %1035 = vmatpush1.bf16.msra.mxu0 %v825
        %1036 = vmatprep.subr.bf16.mxu0 0
        %1037 = vmatpush1.bf16.msra.mxu0 %v826
        %1038 = vmatprep.subr.bf16.mxu0 0
        %1039 = vmatpush1.bf16.msra.mxu0 0
        %1040 = vmatprep.subr.bf16.mxu0 0
        %1041 = vmatpush1.bf16.msra.mxu0 0
        %1042 = vmatprep.subr.bf16.mxu0 0
        %1043 = vmatpush1.bf16.msra.mxu0 0
        %1044 = vmatprep.subr.bf16.mxu0 0
        %1045 = vmatpush1.bf16.msra.mxu0 0
        %1046 = vmatprep.subr.bf16.mxu0 0
        %1047 = vmatpush1.bf16.msra.mxu0 0
        %1048 = vmatprep.subr.bf16.mxu0 0
        %1049 = vmatpush1.bf16.msra.mxu0 0
        %1050 = vmatprep.subr.bf16.mxu0 0
        %1051 = vmatpush1.bf16.msra.mxu0 0
        %1052 = vmatprep.subr.bf16.mxu0 0
        %1053 = vmatpush1.bf16.msra.mxu0 0
        %1054 = vmatprep.subr.bf16.mxu0 0
        %1055 = vmatpush1.bf16.msra.mxu0 0
        %1056 = vmatprep.subr.bf16.mxu0 0
        %1057 = vmatpush1.bf16.msra.mxu0 0
        %1058 = vmatprep.subr.bf16.mxu0 0
        %1059 = vmatpush1.bf16.msra.mxu0 0
        %1060 = vmatprep.subr.bf16.mxu0 0
        %1061 = vmatpush1.bf16.msra.mxu0 0
        %1062 = vmatprep.mubr.bf16.mxu0 0
        %1063 = vmatmul.mubr.bf16.gmra.mrb[0].mxu0 %v1019
        %v1064 = vpop.f32.mrb[0].mxu0
        %v1065 = vadd.f32 0.0, %v1064
        %v1066 = vpop.f32.mrb[0].mxu0
        %v1067 = vpop.f32.mrb[0].mxu0
        %v1068 = vadd.f32 0.0, %v1067
        %v1069 = vpop.f32.mrb[0].mxu0
        %1070 = vmatprep.mubr.bf16.mxu0 0
        %1071 = vmatmul.mubr.bf16.gmra.mrb[0].mxu0 %v1022
        %v1072 = vpop.f32.mrb[0].mxu0
        %v1073 = vadd.f32 0.0, %v1072
        %v1074 = vpop.f32.mrb[0].mxu0
        %v1075 = vpop.f32.mrb[0].mxu0
        %v1076 = vadd.f32 0.0, %v1075
        %v1077 = vpop.f32.mrb[0].mxu0
        %1078 = vmatprep.mubr.bf16.mxu0 0
        %1079 = vmatmul.mubr.bf16.gmra.mrb[0].mxu0 %v1025
        %v1080 = vpop.f32.mrb[0].mxu0
        %v1081 = vadd.f32 0.0, %v1080
        %v1082 = vpop.f32.mrb[0].mxu0
        %v1083 = vpop.f32.mrb[0].mxu0
        %v1084 = vadd.f32 0.0, %v1083
        %v1085 = vpop.f32.mrb[0].mxu0
        %1086 = vmatprep.mubr.bf16.mxu0 0
        %1087 = vmatmul.mubr.bf16.gmra.mrb[0].mxu0 %v1028
        %v1088 = vpop.f32.mrb[0].mxu0
        %v1089 = vadd.f32 0.0, %v1088
        %v1090 = vpop.f32.mrb[0].mxu0
        %v1091 = vpop.f32.mrb[0].mxu0
        %v1092 = vadd.f32 0.0, %v1091
        %v1093 = vpop.f32.mrb[0].mxu0
        %1094 = vdwg.mxu0
        %1099 = vrot.lane.b32.xlu0 %v815, 96
        %v1100 = vpop.permute.xlu0 %1099
        %1101 = vrot.lane.b32.xlu0 %v816, 96
        %v1102 = vpop.permute.xlu0 %1101
        %1103 = vrot.lane.b32.xlu0 %v817, 96
        %v1104 = vpop.permute.xlu0 %1103
        %1105 = vrot.lane.b32.xlu0 %v818, 96
        %v1106 = vpop.permute.xlu0 %1105
        %1111 = vrot.lane.b32.xlu0 %v819, 96
        %v1112 = vpop.permute.xlu0 %1111
        %1113 = vrot.lane.b32.xlu0 %v820, 96
        %v1114 = vpop.permute.xlu0 %1113
        %1115 = vrot.lane.b32.xlu0 %v821, 96
        %v1116 = vpop.permute.xlu0 %1115
        %1117 = vrot.lane.b32.xlu0 %v822, 96
        %v1118 = vpop.permute.xlu0 %1117
        %v1120 = vsel %vm827, %v1100, 0
        %v1123 = vsel %vm827, %v1102, 0
        %v1126 = vsel %vm827, %v1104, 0
        %v1129 = vsel %vm827, %v1106, 0
        %v1132 = vsel %vm827, %v1112, 0
        %v1135 = vsel %vm827, %v1114, 0
        %v1138 = vsel %vm827, %v1116, 0
        %v1141 = vsel %vm827, %v1118, 0
        %1143 = vmatprep.subr.bf16.mxu0 0
        %1144 = vmatpush1.bf16.xpose.msra.mxu0 %v1132
        %1145 = vmatprep.subr.bf16.mxu0 0
        %1146 = vmatpush1.bf16.xpose.msra.mxu0 %v1135
        %1147 = vmatprep.subr.bf16.mxu0 0
        %1148 = vmatpush1.bf16.xpose.msra.mxu0 %v1138
        %1149 = vmatprep.subr.bf16.mxu0 0
        %1150 = vmatpush1.bf16.xpose.msra.mxu0 %v1141
        %1151 = vmatprep.subr.bf16.mxu0 0
        %1152 = vmatpush1.bf16.xpose.msra.mxu0 0
        %1153 = vmatprep.subr.bf16.mxu0 0
        %1154 = vmatpush1.bf16.xpose.msra.mxu0 0
        %1155 = vmatprep.subr.bf16.mxu0 0
        %1156 = vmatpush1.bf16.xpose.msra.mxu0 0
        %1157 = vmatprep.subr.bf16.mxu0 0
        %1158 = vmatpush1.bf16.xpose.msra.mxu0 0
        %1159 = vmatprep.subr.bf16.mxu0 0
        %1160 = vmatpush1.bf16.xpose.msra.mxu0 0
        %1161 = vmatprep.subr.bf16.mxu0 0
        %1162 = vmatpush1.bf16.xpose.msra.mxu0 0
        %1163 = vmatprep.subr.bf16.mxu0 0
        %1164 = vmatpush1.bf16.xpose.msra.mxu0 0
        %1165 = vmatprep.subr.bf16.mxu0 0
        %1166 = vmatpush1.bf16.xpose.msra.mxu0 0
        %1167 = vmatprep.subr.bf16.mxu0 0
        %1168 = vmatpush1.bf16.xpose.msra.mxu0 0
        %1169 = vmatprep.subr.bf16.mxu0 0
        %1170 = vmatpush1.bf16.xpose.msra.mxu0 0
        %1171 = vmatprep.subr.bf16.mxu0 0
        %1172 = vmatpush1.bf16.xpose.msra.mxu0 0
        %1173 = vmatprep.subr.bf16.mxu0 0
        %1174 = vmatpush1.bf16.xpose.msra.mxu0 0
        %1175 = vmatprep.mubr.bf16.mxu0 0
        %1176 = vmatmul.mubr.bf16.gmra.mrb[0].mxu0 %v1120
        %v1177 = vpop.f32.mrb[0].mxu0
        %v1178 = vadd.f32 0.0, %v1177
        %v1179 = vpop.f32.mrb[0].mxu0
        %v1180 = vpop.f32.mrb[0].mxu0
        %v1181 = vadd.f32 0.0, %v1180
        %v1182 = vpop.f32.mrb[0].mxu0
        %1183 = vmatprep.mubr.bf16.mxu0 0
        %1184 = vmatmul.mubr.bf16.gmra.mrb[0].mxu0 %v1123
        %v1185 = vpop.f32.mrb[0].mxu0
        %v1186 = vadd.f32 0.0, %v1185
        %v1187 = vpop.f32.mrb[0].mxu0
        %v1188 = vpop.f32.mrb[0].mxu0
        %v1189 = vadd.f32 0.0, %v1188
        %v1190 = vpop.f32.mrb[0].mxu0
        %1191 = vmatprep.mubr.bf16.mxu0 0
        %1192 = vmatmul.mubr.bf16.gmra.mrb[0].mxu0 %v1126
        %v1193 = vpop.f32.mrb[0].mxu0
        %v1194 = vadd.f32 0.0, %v1193
        %v1195 = vpop.f32.mrb[0].mxu0
        %v1196 = vpop.f32.mrb[0].mxu0
        %v1197 = vadd.f32 0.0, %v1196
        %v1198 = vpop.f32.mrb[0].mxu0
        %1199 = vmatprep.mubr.bf16.mxu0 0
        %1200 = vmatmul.mubr.bf16.gmra.mrb[0].mxu0 %v1129
        %v1201 = vpop.f32.mrb[0].mxu0
        %v1202 = vadd.f32 0.0, %v1201
        %v1203 = vpop.f32.mrb[0].mxu0
        %v1204 = vpop.f32.mrb[0].mxu0
        %v1205 = vadd.f32 0.0, %v1204
        %v1206 = vpop.f32.mrb[0].mxu0
        %1207 = vdwg.mxu0
        %v1208 = vmul.f32 %v1178, 0.17677669
        %v1209 = vmul.f32 %v1181, 0.17677669
        %v1210 = vmul.f32 %v1186, 0.17677669
        %v1211 = vmul.f32 %v1189, 0.17677669
        %v1212 = vmul.f32 %v1194, 0.17677669
        %v1213 = vmul.f32 %v1197, 0.17677669
        %v1214 = vmul.f32 %v1202, 0.17677669
        %v1215 = vmul.f32 %v1205, 0.17677669
        %v1216 = vsel %vm925, %v1208, -inf
        %1217 = vmax.xlane.f32.xlu0 %v1216
        %v1218 = vpop.xlane.xlu0 %1217
        %v1219 = vsel %vm925, %v1209, -inf
        %1220 = vmax.xlane.f32.xlu0 %v1219
        %v1221 = vpop.xlane.xlu0 %1220
        %v1222 = vsel %vm925, %v1210, -inf
        %1223 = vmax.xlane.f32.xlu0 %v1222
        %v1224 = vpop.xlane.xlu0 %1223
        %v1225 = vsel %vm925, %v1211, -inf
        %1226 = vmax.xlane.f32.xlu0 %v1225
        %v1227 = vpop.xlane.xlu0 %1226
        %v1228 = vsel %vm925, %v1212, -inf
        %1229 = vmax.xlane.f32.xlu0 %v1228
        %v1230 = vpop.xlane.xlu0 %1229
        %v1231 = vsel %vm925, %v1213, -inf
        %1232 = vmax.xlane.f32.xlu0 %v1231
        %v1233 = vpop.xlane.xlu0 %1232
        %v1234 = vsel %vm925, %v1214, -inf
        %1235 = vmax.xlane.f32.xlu0 %v1234
        %v1236 = vpop.xlane.xlu0 %1235
        %v1237 = vsel %vm925, %v1215, -inf
        %1238 = vmax.xlane.f32.xlu0 %v1237
        %v1239 = vpop.xlane.xlu0 %1238
        %v1240 = vsub.f32 %v1208, %v1218
        %v1241 = vsub.f32 %v1209, %v1221
        %v1242 = vsub.f32 %v1210, %v1224
        %v1243 = vsub.f32 %v1211, %v1227
        %v1244 = vsub.f32 %v1212, %v1230
        %v1245 = vsub.f32 %v1213, %v1233
        %v1246 = vsub.f32 %v1214, %v1236
        %v1247 = vsub.f32 %v1215, %v1239
        %v1248 = vmul.f32 %v1240, 1.442695
        %v1249 = vpow.pop %v1248
        %v1250 = vmul.f32 %v1241, 1.442695
        %v1251 = vpow.pop %v1250
        %v1252 = vmul.f32 %v1242, 1.442695
        %v1253 = vpow.pop %v1252
        %v1254 = vmul.f32 %v1243, 1.442695
        %v1255 = vpow.pop %v1254
        %v1256 = vmul.f32 %v1244, 1.442695
        %v1257 = vpow.pop %v1256
        %v1258 = vmul.f32 %v1245, 1.442695
        %v1259 = vpow.pop %v1258
        %v1260 = vmul.f32 %v1246, 1.442695
        %v1261 = vpow.pop %v1260
        %v1262 = vmul.f32 %v1247, 1.442695
        %v1263 = vpow.pop %v1262
        %v1264 = vsel %vm925, %v1249, 0.0
        %1265 = vadd.xlane.f32.xlu0 %v1264
        %v1266 = vpop.xlane.xlu0 %1265
        %v1267 = vsel %vm925, %v1251, 0.0
        %1268 = vadd.xlane.f32.xlu0 %v1267
        %v1269 = vpop.xlane.xlu0 %1268
        %v1270 = vsel %vm925, %v1253, 0.0
        %1271 = vadd.xlane.f32.xlu0 %v1270
        %v1272 = vpop.xlane.xlu0 %1271
        %v1273 = vsel %vm925, %v1255, 0.0
        %1274 = vadd.xlane.f32.xlu0 %v1273
        %v1275 = vpop.xlane.xlu0 %1274
        %v1276 = vsel %vm925, %v1257, 0.0
        %1277 = vadd.xlane.f32.xlu0 %v1276
        %v1278 = vpop.xlane.xlu0 %1277
        %v1279 = vsel %vm925, %v1259, 0.0
        %1280 = vadd.xlane.f32.xlu0 %v1279
        %v1281 = vpop.xlane.xlu0 %1280
        %v1282 = vsel %vm925, %v1261, 0.0
        %1283 = vadd.xlane.f32.xlu0 %v1282
        %v1284 = vpop.xlane.xlu0 %1283
        %v1285 = vsel %vm925, %v1263, 0.0
        %1286 = vadd.xlane.f32.xlu0 %v1285
        %v1287 = vpop.xlane.xlu0 %1286
        %v1288 = vrcp.pop %v1266
        %v1289 = vmul.f32 %v1249, %v1288
        %v1290 = vrcp.pop %v1269
        %v1291 = vmul.f32 %v1251, %v1290
        %v1292 = vrcp.pop %v1272
        %v1293 = vmul.f32 %v1253, %v1292
        %v1294 = vrcp.pop %v1275
        %v1295 = vmul.f32 %v1255, %v1294
        %v1296 = vrcp.pop %v1278
        %v1297 = vmul.f32 %v1257, %v1296
        %v1298 = vrcp.pop %v1281
        %v1299 = vmul.f32 %v1259, %v1298
        %v1300 = vrcp.pop %v1284
        %v1301 = vmul.f32 %v1261, %v1300
        %v1302 = vrcp.pop %v1287
        %v1303 = vmul.f32 %v1263, %v1302
        %v1304 = vpack.c.bf16 %v1291, %v1289
        %v1305 = vpack.c.bf16 %v1295, %v1293
        %v1306 = vpack.c.bf16 %v1299, %v1297
        %v1307 = vpack.c.bf16 %v1303, %v1301
        %1312 = vrot.lane.b32.xlu0 %v823, 96
        %v1313 = vpop.permute.xlu0 %1312
        %1314 = vrot.lane.b32.xlu0 %v824, 96
        %v1315 = vpop.permute.xlu0 %1314
        %1316 = vrot.lane.b32.xlu0 %v825, 96
        %v1317 = vpop.permute.xlu0 %1316
        %1318 = vrot.lane.b32.xlu0 %v826, 96
        %v1319 = vpop.permute.xlu0 %1318
        %v1325 = vsel %vm925, %v1304, 0
        %v1328 = vsel %vm925, %v1305, 0
        %v1331 = vsel %vm925, %v1306, 0
        %v1334 = vsel %vm925, %v1307, 0
        %1336 = vmatprep.subr.bf16.mxu0 0
        %1337 = vmatpush1.bf16.msra.mxu0 %v1313
        %1338 = vmatprep.subr.bf16.mxu0 0
        %1339 = vmatpush1.bf16.msra.mxu0 %v1315
        %1340 = vmatprep.subr.bf16.mxu0 0
        %1341 = vmatpush1.bf16.msra.mxu0 %v1317
        %1342 = vmatprep.subr.bf16.mxu0 0
        %1343 = vmatpush1.bf16.msra.mxu0 %v1319
        %1344 = vmatprep.subr.bf16.mxu0 0
        %1345 = vmatpush1.bf16.msra.mxu0 0
        %1346 = vmatprep.subr.bf16.mxu0 0
        %1347 = vmatpush1.bf16.msra.mxu0 0
        %1348 = vmatprep.subr.bf16.mxu0 0
        %1349 = vmatpush1.bf16.msra.mxu0 0
        %1350 = vmatprep.subr.bf16.mxu0 0
        %1351 = vmatpush1.bf16.msra.mxu0 0
        %1352 = vmatprep.subr.bf16.mxu0 0
        %1353 = vmatpush1.bf16.msra.mxu0 0
        %1354 = vmatprep.subr.bf16.mxu0 0
        %1355 = vmatpush1.bf16.msra.mxu0 0
        %1356 = vmatprep.subr.bf16.mxu0 0
        %1357 = vmatpush1.bf16.msra.mxu0 0
        %1358 = vmatprep.subr.bf16.mxu0 0
        %1359 = vmatpush1.bf16.msra.mxu0 0
        %1360 = vmatprep.subr.bf16.mxu0 0
        %1361 = vmatpush1.bf16.msra.mxu0 0
        %1362 = vmatprep.subr.bf16.mxu0 0
        %1363 = vmatpush1.bf16.msra.mxu0 0
        %1364 = vmatprep.subr.bf16.mxu0 0
        %1365 = vmatpush1.bf16.msra.mxu0 0
        %1366 = vmatprep.subr.bf16.mxu0 0
        %1367 = vmatpush1.bf16.msra.mxu0 0
        %1368 = vmatprep.mubr.bf16.mxu0 0
        %1369 = vmatmul.mubr.bf16.gmra.mrb[0].mxu0 %v1325
        %v1370 = vpop.f32.mrb[0].mxu0
        %v1371 = vadd.f32 0.0, %v1370
        %v1372 = vpop.f32.mrb[0].mxu0
        %v1373 = vpop.f32.mrb[0].mxu0
        %v1374 = vadd.f32 0.0, %v1373
        %v1375 = vpop.f32.mrb[0].mxu0
        %1376 = vmatprep.mubr.bf16.mxu0 0
        %1377 = vmatmul.mubr.bf16.gmra.mrb[0].mxu0 %v1328
        %v1378 = vpop.f32.mrb[0].mxu0
        %v1379 = vadd.f32 0.0, %v1378
        %v1380 = vpop.f32.mrb[0].mxu0
        %v1381 = vpop.f32.mrb[0].mxu0
        %v1382 = vadd.f32 0.0, %v1381
        %v1383 = vpop.f32.mrb[0].mxu0
        %1384 = vmatprep.mubr.bf16.mxu0 0
        %1385 = vmatmul.mubr.bf16.gmra.mrb[0].mxu0 %v1331
        %v1386 = vpop.f32.mrb[0].mxu0
        %v1387 = vadd.f32 0.0, %v1386
        %v1388 = vpop.f32.mrb[0].mxu0
        %v1389 = vpop.f32.mrb[0].mxu0
        %v1390 = vadd.f32 0.0, %v1389
        %v1391 = vpop.f32.mrb[0].mxu0
        %1392 = vmatprep.mubr.bf16.mxu0 0
        %1393 = vmatmul.mubr.bf16.gmra.mrb[0].mxu0 %v1334
        %v1394 = vpop.f32.mrb[0].mxu0
        %v1395 = vadd.f32 0.0, %v1394
        %v1396 = vpop.f32.mrb[0].mxu0
        %v1397 = vpop.f32.mrb[0].mxu0
        %v1398 = vadd.f32 0.0, %v1397
        %v1399 = vpop.f32.mrb[0].mxu0
        %1400 = vdwg.mxu0
        %1401 = vrot.lane.b32.xlu0 %v815, 64
        %v1402 = vpop.permute.xlu0 %1401
        %1403 = vrot.lane.b32.xlu0 %v816, 64
        %v1404 = vpop.permute.xlu0 %1403
        %1405 = vrot.lane.b32.xlu0 %v817, 64
        %v1406 = vpop.permute.xlu0 %1405
        %1407 = vrot.lane.b32.xlu0 %v818, 64
        %v1408 = vpop.permute.xlu0 %1407
        %1409 = vrot.lane.b32.xlu0 %v819, 64
        %v1410 = vpop.permute.xlu0 %1409
        %1411 = vrot.lane.b32.xlu0 %v820, 64
        %v1412 = vpop.permute.xlu0 %1411
        %1413 = vrot.lane.b32.xlu0 %v821, 64
        %v1414 = vpop.permute.xlu0 %1413
        %1415 = vrot.lane.b32.xlu0 %v822, 64
        %v1416 = vpop.permute.xlu0 %1415
        %v1418 = vsel %vm827, %v1402, 0
        %v1421 = vsel %vm827, %v1404, 0
        %v1424 = vsel %vm827, %v1406, 0
        %v1427 = vsel %vm827, %v1408, 0
        %v1430 = vsel %vm827, %v1410, 0
        %v1433 = vsel %vm827, %v1412, 0
        %v1436 = vsel %vm827, %v1414, 0
        %v1439 = vsel %vm827, %v1416, 0
        %1441 = vmatprep.subr.bf16.mxu0 0
        %1442 = vmatpush1.bf16.xpose.msra.mxu0 %v1430
        %1443 = vmatprep.subr.bf16.mxu0 0
        %1444 = vmatpush1.bf16.xpose.msra.mxu0 %v1433
        %1445 = vmatprep.subr.bf16.mxu0 0
        %1446 = vmatpush1.bf16.xpose.msra.mxu0 %v1436
        %1447 = vmatprep.subr.bf16.mxu0 0
        %1448 = vmatpush1.bf16.xpose.msra.mxu0 %v1439
        %1449 = vmatprep.subr.bf16.mxu0 0
        %1450 = vmatpush1.bf16.xpose.msra.mxu0 0
        %1451 = vmatprep.subr.bf16.mxu0 0
        %1452 = vmatpush1.bf16.xpose.msra.mxu0 0
        %1453 = vmatprep.subr.bf16.mxu0 0
        %1454 = vmatpush1.bf16.xpose.msra.mxu0 0
        %1455 = vmatprep.subr.bf16.mxu0 0
        %1456 = vmatpush1.bf16.xpose.msra.mxu0 0
        %1457 = vmatprep.subr.bf16.mxu0 0
        %1458 = vmatpush1.bf16.xpose.msra.mxu0 0
        %1459 = vmatprep.subr.bf16.mxu0 0
        %1460 = vmatpush1.bf16.xpose.msra.mxu0 0
        %1461 = vmatprep.subr.bf16.mxu0 0
        %1462 = vmatpush1.bf16.xpose.msra.mxu0 0
        %1463 = vmatprep.subr.bf16.mxu0 0
        %1464 = vmatpush1.bf16.xpose.msra.mxu0 0
        %1465 = vmatprep.subr.bf16.mxu0 0
        %1466 = vmatpush1.bf16.xpose.msra.mxu0 0
        %1467 = vmatprep.subr.bf16.mxu0 0
        %1468 = vmatpush1.bf16.xpose.msra.mxu0 0
        %1469 = vmatprep.subr.bf16.mxu0 0
        %1470 = vmatpush1.bf16.xpose.msra.mxu0 0
        %1471 = vmatprep.subr.bf16.mxu0 0
        %1472 = vmatpush1.bf16.xpose.msra.mxu0 0
        %1473 = vmatprep.mubr.bf16.mxu0 0
        %1474 = vmatmul.mubr.bf16.gmra.mrb[0].mxu0 %v1418
        %v1475 = vpop.f32.mrb[0].mxu0
        %v1476 = vadd.f32 0.0, %v1475
        %v1477 = vpop.f32.mrb[0].mxu0
        %v1478 = vpop.f32.mrb[0].mxu0
        %v1479 = vadd.f32 0.0, %v1478
        %v1480 = vpop.f32.mrb[0].mxu0
        %1481 = vmatprep.mubr.bf16.mxu0 0
        %1482 = vmatmul.mubr.bf16.gmra.mrb[0].mxu0 %v1421
        %v1483 = vpop.f32.mrb[0].mxu0
        %v1484 = vadd.f32 0.0, %v1483
        %v1485 = vpop.f32.mrb[0].mxu0
        %v1486 = vpop.f32.mrb[0].mxu0
        %v1487 = vadd.f32 0.0, %v1486
        %v1488 = vpop.f32.mrb[0].mxu0
        %1489 = vmatprep.mubr.bf16.mxu0 0
        %1490 = vmatmul.mubr.bf16.gmra.mrb[0].mxu0 %v1424
        %v1491 = vpop.f32.mrb[0].mxu0
        %v1492 = vadd.f32 0.0, %v1491
        %v1493 = vpop.f32.mrb[0].mxu0
        %v1494 = vpop.f32.mrb[0].mxu0
        %v1495 = vadd.f32 0.0, %v1494
        %v1496 = vpop.f32.mrb[0].mxu0
        %1497 = vmatprep.mubr.bf16.mxu0 0
        %1498 = vmatmul.mubr.bf16.gmra.mrb[0].mxu0 %v1427
        %v1499 = vpop.f32.mrb[0].mxu0
        %v1500 = vadd.f32 0.0, %v1499
        %v1501 = vpop.f32.mrb[0].mxu0
        %v1502 = vpop.f32.mrb[0].mxu0
        %v1503 = vadd.f32 0.0, %v1502
        %v1504 = vpop.f32.mrb[0].mxu0
        %1505 = vdwg.mxu0
        %v1506 = vmul.f32 %v1476, 0.17677669
        %v1507 = vmul.f32 %v1479, 0.17677669
        %v1508 = vmul.f32 %v1484, 0.17677669
        %v1509 = vmul.f32 %v1487, 0.17677669
        %v1510 = vmul.f32 %v1492, 0.17677669
        %v1511 = vmul.f32 %v1495, 0.17677669
        %v1512 = vmul.f32 %v1500, 0.17677669
        %v1513 = vmul.f32 %v1503, 0.17677669
        %v1514 = vsel %vm925, %v1506, -inf
        %1515 = vmax.xlane.f32.xlu0 %v1514
        %v1516 = vpop.xlane.xlu0 %1515
        %v1517 = vsel %vm925, %v1507, -inf
        %1518 = vmax.xlane.f32.xlu0 %v1517
        %v1519 = vpop.xlane.xlu0 %1518
        %v1520 = vsel %vm925, %v1508, -inf
        %1521 = vmax.xlane.f32.xlu0 %v1520
        %v1522 = vpop.xlane.xlu0 %1521
        %v1523 = vsel %vm925, %v1509, -inf
        %1524 = vmax.xlane.f32.xlu0 %v1523
        %v1525 = vpop.xlane.xlu0 %1524
        %v1526 = vsel %vm925, %v1510, -inf
        %1527 = vmax.xlane.f32.xlu0 %v1526
        %v1528 = vpop.xlane.xlu0 %1527
        %v1529 = vsel %vm925, %v1511, -inf
        %1530 = vmax.xlane.f32.xlu0 %v1529
        %v1531 = vpop.xlane.xlu0 %1530
        %v1532 = vsel %vm925, %v1512, -inf
        %1533 = vmax.xlane.f32.xlu0 %v1532
        %v1534 = vpop.xlane.xlu0 %1533
        %v1535 = vsel %vm925, %v1513, -inf
        %1536 = vmax.xlane.f32.xlu0 %v1535
        %v1537 = vpop.xlane.xlu0 %1536
        %v1538 = vsub.f32 %v1506, %v1516
        %v1539 = vsub.f32 %v1507, %v1519
        %v1540 = vsub.f32 %v1508, %v1522
        %v1541 = vsub.f32 %v1509, %v1525
        %v1542 = vsub.f32 %v1510, %v1528
        %v1543 = vsub.f32 %v1511, %v1531
        %v1544 = vsub.f32 %v1512, %v1534
        %v1545 = vsub.f32 %v1513, %v1537
        %v1546 = vmul.f32 %v1538, 1.442695
        %v1547 = vpow.pop %v1546
        %v1548 = vmul.f32 %v1539, 1.442695
        %v1549 = vpow.pop %v1548
        %v1550 = vmul.f32 %v1540, 1.442695
        %v1551 = vpow.pop %v1550
        %v1552 = vmul.f32 %v1541, 1.442695
        %v1553 = vpow.pop %v1552
        %v1554 = vmul.f32 %v1542, 1.442695
        %v1555 = vpow.pop %v1554
        %v1556 = vmul.f32 %v1543, 1.442695
        %v1557 = vpow.pop %v1556
        %v1558 = vmul.f32 %v1544, 1.442695
        %v1559 = vpow.pop %v1558
        %v1560 = vmul.f32 %v1545, 1.442695
        %v1561 = vpow.pop %v1560
        %v1562 = vsel %vm925, %v1547, 0.0
        %1563 = vadd.xlane.f32.xlu0 %v1562
        %v1564 = vpop.xlane.xlu0 %1563
        %v1565 = vsel %vm925, %v1549, 0.0
        %1566 = vadd.xlane.f32.xlu0 %v1565
        %v1567 = vpop.xlane.xlu0 %1566
        %v1568 = vsel %vm925, %v1551, 0.0
        %1569 = vadd.xlane.f32.xlu0 %v1568
        %v1570 = vpop.xlane.xlu0 %1569
        %v1571 = vsel %vm925, %v1553, 0.0
        %1572 = vadd.xlane.f32.xlu0 %v1571
        %v1573 = vpop.xlane.xlu0 %1572
        %v1574 = vsel %vm925, %v1555, 0.0
        %1575 = vadd.xlane.f32.xlu0 %v1574
        %v1576 = vpop.xlane.xlu0 %1575
        %v1577 = vsel %vm925, %v1557, 0.0
        %1578 = vadd.xlane.f32.xlu0 %v1577
        %v1579 = vpop.xlane.xlu0 %1578
        %v1580 = vsel %vm925, %v1559, 0.0
        %1581 = vadd.xlane.f32.xlu0 %v1580
        %v1582 = vpop.xlane.xlu0 %1581
        %v1583 = vsel %vm925, %v1561, 0.0
        %1584 = vadd.xlane.f32.xlu0 %v1583
        %v1585 = vpop.xlane.xlu0 %1584
        %v1586 = vrcp.pop %v1564
        %v1587 = vmul.f32 %v1547, %v1586
        %v1588 = vrcp.pop %v1567
        %v1589 = vmul.f32 %v1549, %v1588
        %v1590 = vrcp.pop %v1570
        %v1591 = vmul.f32 %v1551, %v1590
        %v1592 = vrcp.pop %v1573
        %v1593 = vmul.f32 %v1553, %v1592
        %v1594 = vrcp.pop %v1576
        %v1595 = vmul.f32 %v1555, %v1594
        %v1596 = vrcp.pop %v1579
        %v1597 = vmul.f32 %v1557, %v1596
        %v1598 = vrcp.pop %v1582
        %v1599 = vmul.f32 %v1559, %v1598
        %v1600 = vrcp.pop %v1585
        %v1601 = vmul.f32 %v1561, %v1600
        %v1602 = vpack.c.bf16 %v1589, %v1587
        %v1603 = vpack.c.bf16 %v1593, %v1591
        %v1604 = vpack.c.bf16 %v1597, %v1595
        %v1605 = vpack.c.bf16 %v1601, %v1599
        %1606 = vrot.lane.b32.xlu0 %v823, 64
        %v1607 = vpop.permute.xlu0 %1606
        %1608 = vrot.lane.b32.xlu0 %v824, 64
        %v1609 = vpop.permute.xlu0 %1608
        %1610 = vrot.lane.b32.xlu0 %v825, 64
        %v1611 = vpop.permute.xlu0 %1610
        %1612 = vrot.lane.b32.xlu0 %v826, 64
        %v1613 = vpop.permute.xlu0 %1612
        %v1619 = vsel %vm925, %v1602, 0
        %v1622 = vsel %vm925, %v1603, 0
        %v1625 = vsel %vm925, %v1604, 0
        %v1628 = vsel %vm925, %v1605, 0
        %1630 = vmatprep.subr.bf16.mxu0 0
        %1631 = vmatpush1.bf16.msra.mxu0 %v1607
        %1632 = vmatprep.subr.bf16.mxu0 0
        %1633 = vmatpush1.bf16.msra.mxu0 %v1609
        %1634 = vmatprep.subr.bf16.mxu0 0
        %1635 = vmatpush1.bf16.msra.mxu0 %v1611
        %1636 = vmatprep.subr.bf16.mxu0 0
        %1637 = vmatpush1.bf16.msra.mxu0 %v1613
        %1638 = vmatprep.subr.bf16.mxu0 0
        %1639 = vmatpush1.bf16.msra.mxu0 0
        %1640 = vmatprep.subr.bf16.mxu0 0
        %1641 = vmatpush1.bf16.msra.mxu0 0
        %1642 = vmatprep.subr.bf16.mxu0 0
        %1643 = vmatpush1.bf16.msra.mxu0 0
        %1644 = vmatprep.subr.bf16.mxu0 0
        %1645 = vmatpush1.bf16.msra.mxu0 0
        %1646 = vmatprep.subr.bf16.mxu0 0
        %1647 = vmatpush1.bf16.msra.mxu0 0
        %1648 = vmatprep.subr.bf16.mxu0 0
        %1649 = vmatpush1.bf16.msra.mxu0 0
        %1650 = vmatprep.subr.bf16.mxu0 0
        %1651 = vmatpush1.bf16.msra.mxu0 0
        %1652 = vmatprep.subr.bf16.mxu0 0
        %1653 = vmatpush1.bf16.msra.mxu0 0
        %1654 = vmatprep.subr.bf16.mxu0 0
        %1655 = vmatpush1.bf16.msra.mxu0 0
        %1656 = vmatprep.subr.bf16.mxu0 0
        %1657 = vmatpush1.bf16.msra.mxu0 0
        %1658 = vmatprep.subr.bf16.mxu0 0
        %1659 = vmatpush1.bf16.msra.mxu0 0
        %1660 = vmatprep.subr.bf16.mxu0 0
        %1661 = vmatpush1.bf16.msra.mxu0 0
        %1662 = vmatprep.mubr.bf16.mxu0 0
        %1663 = vmatmul.mubr.bf16.gmra.mrb[0].mxu0 %v1619
        %v1664 = vpop.f32.mrb[0].mxu0
        %v1665 = vadd.f32 0.0, %v1664
        %v1666 = vpop.f32.mrb[0].mxu0
        %v1667 = vpop.f32.mrb[0].mxu0
        %v1668 = vadd.f32 0.0, %v1667
        %v1669 = vpop.f32.mrb[0].mxu0
        %1670 = vmatprep.mubr.bf16.mxu0 0
        %1671 = vmatmul.mubr.bf16.gmra.mrb[0].mxu0 %v1622
        %v1672 = vpop.f32.mrb[0].mxu0
        %v1673 = vadd.f32 0.0, %v1672
        %v1674 = vpop.f32.mrb[0].mxu0
        %v1675 = vpop.f32.mrb[0].mxu0
        %v1676 = vadd.f32 0.0, %v1675
        %v1677 = vpop.f32.mrb[0].mxu0
        %1678 = vmatprep.mubr.bf16.mxu0 0
        %1679 = vmatmul.mubr.bf16.gmra.mrb[0].mxu0 %v1625
        %v1680 = vpop.f32.mrb[0].mxu0
        %v1681 = vadd.f32 0.0, %v1680
        %v1682 = vpop.f32.mrb[0].mxu0
        %v1683 = vpop.f32.mrb[0].mxu0
        %v1684 = vadd.f32 0.0, %v1683
        %v1685 = vpop.f32.mrb[0].mxu0
        %1686 = vmatprep.mubr.bf16.mxu0 0
        %1687 = vmatmul.mubr.bf16.gmra.mrb[0].mxu0 %v1628
        %v1688 = vpop.f32.mrb[0].mxu0
        %v1689 = vadd.f32 0.0, %v1688
        %v1690 = vpop.f32.mrb[0].mxu0
        %v1691 = vpop.f32.mrb[0].mxu0
        %v1692 = vadd.f32 0.0, %v1691
        %v1693 = vpop.f32.mrb[0].mxu0
        %1694 = vdwg.mxu0
        %1695 = vrot.lane.b32.xlu0 %v815, 32
        %v1696 = vpop.permute.xlu0 %1695
        %1697 = vrot.lane.b32.xlu0 %v816, 32
        %v1698 = vpop.permute.xlu0 %1697
        %1699 = vrot.lane.b32.xlu0 %v817, 32
        %v1700 = vpop.permute.xlu0 %1699
        %1701 = vrot.lane.b32.xlu0 %v818, 32
        %v1702 = vpop.permute.xlu0 %1701
        %1703 = vrot.lane.b32.xlu0 %v819, 32
        %v1704 = vpop.permute.xlu0 %1703
        %1705 = vrot.lane.b32.xlu0 %v820, 32
        %v1706 = vpop.permute.xlu0 %1705
        %1707 = vrot.lane.b32.xlu0 %v821, 32
        %v1708 = vpop.permute.xlu0 %1707
        %1709 = vrot.lane.b32.xlu0 %v822, 32
        %v1710 = vpop.permute.xlu0 %1709
        %v1712 = vsel %vm827, %v1696, 0
        %v1715 = vsel %vm827, %v1698, 0
        %v1718 = vsel %vm827, %v1700, 0
        %v1721 = vsel %vm827, %v1702, 0
        %v1724 = vsel %vm827, %v1704, 0
        %v1727 = vsel %vm827, %v1706, 0
        %v1730 = vsel %vm827, %v1708, 0
        %v1733 = vsel %vm827, %v1710, 0
        %1735 = vmatprep.subr.bf16.mxu0 0
        %1736 = vmatpush1.bf16.xpose.msra.mxu0 %v1724
        %1737 = vmatprep.subr.bf16.mxu0 0
        %1738 = vmatpush1.bf16.xpose.msra.mxu0 %v1727
        %1739 = vmatprep.subr.bf16.mxu0 0
        %1740 = vmatpush1.bf16.xpose.msra.mxu0 %v1730
        %1741 = vmatprep.subr.bf16.mxu0 0
        %1742 = vmatpush1.bf16.xpose.msra.mxu0 %v1733
        %1743 = vmatprep.subr.bf16.mxu0 0
        %1744 = vmatpush1.bf16.xpose.msra.mxu0 0
        %1745 = vmatprep.subr.bf16.mxu0 0
        %1746 = vmatpush1.bf16.xpose.msra.mxu0 0
        %1747 = vmatprep.subr.bf16.mxu0 0
        %1748 = vmatpush1.bf16.xpose.msra.mxu0 0
        %1749 = vmatprep.subr.bf16.mxu0 0
        %1750 = vmatpush1.bf16.xpose.msra.mxu0 0
        %1751 = vmatprep.subr.bf16.mxu0 0
        %1752 = vmatpush1.bf16.xpose.msra.mxu0 0
        %1753 = vmatprep.subr.bf16.mxu0 0
        %1754 = vmatpush1.bf16.xpose.msra.mxu0 0
        %1755 = vmatprep.subr.bf16.mxu0 0
        %1756 = vmatpush1.bf16.xpose.msra.mxu0 0
        %1757 = vmatprep.subr.bf16.mxu0 0
        %1758 = vmatpush1.bf16.xpose.msra.mxu0 0
        %1759 = vmatprep.subr.bf16.mxu0 0
        %1760 = vmatpush1.bf16.xpose.msra.mxu0 0
        %1761 = vmatprep.subr.bf16.mxu0 0
        %1762 = vmatpush1.bf16.xpose.msra.mxu0 0
        %1763 = vmatprep.subr.bf16.mxu0 0
        %1764 = vmatpush1.bf16.xpose.msra.mxu0 0
        %1765 = vmatprep.subr.bf16.mxu0 0
        %1766 = vmatpush1.bf16.xpose.msra.mxu0 0
        %1767 = vmatprep.mubr.bf16.mxu0 0
        %1768 = vmatmul.mubr.bf16.gmra.mrb[0].mxu0 %v1712
        %v1769 = vpop.f32.mrb[0].mxu0
        %v1770 = vadd.f32 0.0, %v1769
        %v1771 = vpop.f32.mrb[0].mxu0
        %v1772 = vpop.f32.mrb[0].mxu0
        %v1773 = vadd.f32 0.0, %v1772
        %v1774 = vpop.f32.mrb[0].mxu0
        %1775 = vmatprep.mubr.bf16.mxu0 0
        %1776 = vmatmul.mubr.bf16.gmra.mrb[0].mxu0 %v1715
        %v1777 = vpop.f32.mrb[0].mxu0
        %v1778 = vadd.f32 0.0, %v1777
        %v1779 = vpop.f32.mrb[0].mxu0
        %v1780 = vpop.f32.mrb[0].mxu0
        %v1781 = vadd.f32 0.0, %v1780
        %v1782 = vpop.f32.mrb[0].mxu0
        %1783 = vmatprep.mubr.bf16.mxu0 0
        %1784 = vmatmul.mubr.bf16.gmra.mrb[0].mxu0 %v1718
        %v1785 = vpop.f32.mrb[0].mxu0
        %v1786 = vadd.f32 0.0, %v1785
        %v1787 = vpop.f32.mrb[0].mxu0
        %v1788 = vpop.f32.mrb[0].mxu0
        %v1789 = vadd.f32 0.0, %v1788
        %v1790 = vpop.f32.mrb[0].mxu0
        %1791 = vmatprep.mubr.bf16.mxu0 0
        %1792 = vmatmul.mubr.bf16.gmra.mrb[0].mxu0 %v1721
        %v1793 = vpop.f32.mrb[0].mxu0
        %v1794 = vadd.f32 0.0, %v1793
        %v1795 = vpop.f32.mrb[0].mxu0
        %v1796 = vpop.f32.mrb[0].mxu0
        %v1797 = vadd.f32 0.0, %v1796
        %v1798 = vpop.f32.mrb[0].mxu0
        %1799 = vdwg.mxu0
        %v1800 = vmul.f32 %v1770, 0.17677669
        %v1801 = vmul.f32 %v1773, 0.17677669
        %v1802 = vmul.f32 %v1778, 0.17677669
        %v1803 = vmul.f32 %v1781, 0.17677669
        %v1804 = vmul.f32 %v1786, 0.17677669
        %v1805 = vmul.f32 %v1789, 0.17677669
        %v1806 = vmul.f32 %v1794, 0.17677669
        %v1807 = vmul.f32 %v1797, 0.17677669
        %v1808 = vsel %vm925, %v1800, -inf
        %1809 = vmax.xlane.f32.xlu0 %v1808
        %v1810 = vpop.xlane.xlu0 %1809
        %v1811 = vsel %vm925, %v1801, -inf
        %1812 = vmax.xlane.f32.xlu0 %v1811
        %v1813 = vpop.xlane.xlu0 %1812
        %v1814 = vsel %vm925, %v1802, -inf
        %1815 = vmax.xlane.f32.xlu0 %v1814
        %v1816 = vpop.xlane.xlu0 %1815
        %v1817 = vsel %vm925, %v1803, -inf
        %1818 = vmax.xlane.f32.xlu0 %v1817
        %v1819 = vpop.xlane.xlu0 %1818
        %v1820 = vsel %vm925, %v1804, -inf
        %1821 = vmax.xlane.f32.xlu0 %v1820
        %v1822 = vpop.xlane.xlu0 %1821
        %v1823 = vsel %vm925, %v1805, -inf
        %1824 = vmax.xlane.f32.xlu0 %v1823
        %v1825 = vpop.xlane.xlu0 %1824
        %v1826 = vsel %vm925, %v1806, -inf
        %1827 = vmax.xlane.f32.xlu0 %v1826
        %v1828 = vpop.xlane.xlu0 %1827
        %v1829 = vsel %vm925, %v1807, -inf
        %1830 = vmax.xlane.f32.xlu0 %v1829
        %v1831 = vpop.xlane.xlu0 %1830
        %v1832 = vsub.f32 %v1800, %v1810
        %v1833 = vsub.f32 %v1801, %v1813
        %v1834 = vsub.f32 %v1802, %v1816
        %v1835 = vsub.f32 %v1803, %v1819
        %v1836 = vsub.f32 %v1804, %v1822
        %v1837 = vsub.f32 %v1805, %v1825
        %v1838 = vsub.f32 %v1806, %v1828
        %v1839 = vsub.f32 %v1807, %v1831
        %v1840 = vmul.f32 %v1832, 1.442695
        %v1841 = vpow.pop %v1840
        %v1842 = vmul.f32 %v1833, 1.442695
        %v1843 = vpow.pop %v1842
        %v1844 = vmul.f32 %v1834, 1.442695
        %v1845 = vpow.pop %v1844
        %v1846 = vmul.f32 %v1835, 1.442695
        %v1847 = vpow.pop %v1846
        %v1848 = vmul.f32 %v1836, 1.442695
        %v1849 = vpow.pop %v1848
        %v1850 = vmul.f32 %v1837, 1.442695
        %v1851 = vpow.pop %v1850
        %v1852 = vmul.f32 %v1838, 1.442695
        %v1853 = vpow.pop %v1852
        %v1854 = vmul.f32 %v1839, 1.442695
        %v1855 = vpow.pop %v1854
        %v1856 = vsel %vm925, %v1841, 0.0
        %1857 = vadd.xlane.f32.xlu0 %v1856
        %v1858 = vpop.xlane.xlu0 %1857
        %v1859 = vsel %vm925, %v1843, 0.0
        %1860 = vadd.xlane.f32.xlu0 %v1859
        %v1861 = vpop.xlane.xlu0 %1860
        %v1862 = vsel %vm925, %v1845, 0.0
        %1863 = vadd.xlane.f32.xlu0 %v1862
        %v1864 = vpop.xlane.xlu0 %1863
        %v1865 = vsel %vm925, %v1847, 0.0
        %1866 = vadd.xlane.f32.xlu0 %v1865
        %v1867 = vpop.xlane.xlu0 %1866
        %v1868 = vsel %vm925, %v1849, 0.0
        %1869 = vadd.xlane.f32.xlu0 %v1868
        %v1870 = vpop.xlane.xlu0 %1869
        %v1871 = vsel %vm925, %v1851, 0.0
        %1872 = vadd.xlane.f32.xlu0 %v1871
        %v1873 = vpop.xlane.xlu0 %1872
        %v1874 = vsel %vm925, %v1853, 0.0
        %1875 = vadd.xlane.f32.xlu0 %v1874
        %v1876 = vpop.xlane.xlu0 %1875
        %v1877 = vsel %vm925, %v1855, 0.0
        %1878 = vadd.xlane.f32.xlu0 %v1877
        %v1879 = vpop.xlane.xlu0 %1878
        %v1880 = vrcp.pop %v1858
        %v1881 = vmul.f32 %v1841, %v1880
        %v1882 = vrcp.pop %v1861
        %v1883 = vmul.f32 %v1843, %v1882
        %v1884 = vrcp.pop %v1864
        %v1885 = vmul.f32 %v1845, %v1884
        %v1886 = vrcp.pop %v1867
        %v1887 = vmul.f32 %v1847, %v1886
        %v1888 = vrcp.pop %v1870
        %v1889 = vmul.f32 %v1849, %v1888
        %v1890 = vrcp.pop %v1873
        %v1891 = vmul.f32 %v1851, %v1890
        %v1892 = vrcp.pop %v1876
        %v1893 = vmul.f32 %v1853, %v1892
        %v1894 = vrcp.pop %v1879
        %v1895 = vmul.f32 %v1855, %v1894
        %v1896 = vpack.c.bf16 %v1883, %v1881
        %v1897 = vpack.c.bf16 %v1887, %v1885
        %v1898 = vpack.c.bf16 %v1891, %v1889
        %v1899 = vpack.c.bf16 %v1895, %v1893
        %1900 = vrot.lane.b32.xlu0 %v823, 32
        %v1901 = vpop.permute.xlu0 %1900
        %1902 = vrot.lane.b32.xlu0 %v824, 32
        %v1903 = vpop.permute.xlu0 %1902
        %1904 = vrot.lane.b32.xlu0 %v825, 32
        %v1905 = vpop.permute.xlu0 %1904
        %1906 = vrot.lane.b32.xlu0 %v826, 32
        %v1907 = vpop.permute.xlu0 %1906
        %v1913 = vsel %vm925, %v1896, 0
        %v1916 = vsel %vm925, %v1897, 0
        %v1919 = vsel %vm925, %v1898, 0
        %v1922 = vsel %vm925, %v1899, 0
        %1924 = vmatprep.subr.bf16.mxu0 0
        %1925 = vmatpush1.bf16.msra.mxu0 %v1901
        %1926 = vmatprep.subr.bf16.mxu0 0
        %1927 = vmatpush1.bf16.msra.mxu0 %v1903
        %1928 = vmatprep.subr.bf16.mxu0 0
        %1929 = vmatpush1.bf16.msra.mxu0 %v1905
        %1930 = vmatprep.subr.bf16.mxu0 0
        %1931 = vmatpush1.bf16.msra.mxu0 %v1907
        %1932 = vmatprep.subr.bf16.mxu0 0
        %1933 = vmatpush1.bf16.msra.mxu0 0
        %1934 = vmatprep.subr.bf16.mxu0 0
        %1935 = vmatpush1.bf16.msra.mxu0 0
        %1936 = vmatprep.subr.bf16.mxu0 0
        %1937 = vmatpush1.bf16.msra.mxu0 0
        %1938 = vmatprep.subr.bf16.mxu0 0
        %1939 = vmatpush1.bf16.msra.mxu0 0
        %1940 = vmatprep.subr.bf16.mxu0 0
        %1941 = vmatpush1.bf16.msra.mxu0 0
        %1942 = vmatprep.subr.bf16.mxu0 0
        %1943 = vmatpush1.bf16.msra.mxu0 0
        %1944 = vmatprep.subr.bf16.mxu0 0
        %1945 = vmatpush1.bf16.msra.mxu0 0
        %1946 = vmatprep.subr.bf16.mxu0 0
        %1947 = vmatpush1.bf16.msra.mxu0 0
        %1948 = vmatprep.subr.bf16.mxu0 0
        %1949 = vmatpush1.bf16.msra.mxu0 0
        %1950 = vmatprep.subr.bf16.mxu0 0
        %1951 = vmatpush1.bf16.msra.mxu0 0
        %1952 = vmatprep.subr.bf16.mxu0 0
        %1953 = vmatpush1.bf16.msra.mxu0 0
        %1954 = vmatprep.subr.bf16.mxu0 0
        %1955 = vmatpush1.bf16.msra.mxu0 0
        %1956 = vmatprep.mubr.bf16.mxu0 0
        %1957 = vmatmul.mubr.bf16.gmra.mrb[0].mxu0 %v1913
        %v1958 = vpop.f32.mrb[0].mxu0
        %v1959 = vadd.f32 0.0, %v1958
        %v1960 = vpop.f32.mrb[0].mxu0
        %v1961 = vpop.f32.mrb[0].mxu0
        %v1962 = vadd.f32 0.0, %v1961
        %v1963 = vpop.f32.mrb[0].mxu0
        %1964 = vmatprep.mubr.bf16.mxu0 0
        %1965 = vmatmul.mubr.bf16.gmra.mrb[0].mxu0 %v1916
        %v1966 = vpop.f32.mrb[0].mxu0
        %v1967 = vadd.f32 0.0, %v1966
        %v1968 = vpop.f32.mrb[0].mxu0
        %v1969 = vpop.f32.mrb[0].mxu0
        %v1970 = vadd.f32 0.0, %v1969
        %v1971 = vpop.f32.mrb[0].mxu0
        %1972 = vmatprep.mubr.bf16.mxu0 0
        %1973 = vmatmul.mubr.bf16.gmra.mrb[0].mxu0 %v1919
        %v1974 = vpop.f32.mrb[0].mxu0
        %v1975 = vadd.f32 0.0, %v1974
        %v1976 = vpop.f32.mrb[0].mxu0
        %v1977 = vpop.f32.mrb[0].mxu0
        %v1978 = vadd.f32 0.0, %v1977
        %v1979 = vpop.f32.mrb[0].mxu0
        %1980 = vmatprep.mubr.bf16.mxu0 0
        %1981 = vmatmul.mubr.bf16.gmra.mrb[0].mxu0 %v1922
        %v1982 = vpop.f32.mrb[0].mxu0
        %v1983 = vadd.f32 0.0, %v1982
        %v1984 = vpop.f32.mrb[0].mxu0
        %v1985 = vpop.f32.mrb[0].mxu0
        %v1986 = vadd.f32 0.0, %v1985
        %v1987 = vpop.f32.mrb[0].mxu0
        %1988 = vdwg.mxu0
        %1997 = vrot.lane.b32.xlu0 %v1371, 32
        %v1998 = vpop.permute.xlu0 %1997
        %1999 = vrot.lane.b32.xlu0 %v1374, 32
        %v2000 = vpop.permute.xlu0 %1999
        %2001 = vrot.lane.b32.xlu0 %v1379, 32
        %v2002 = vpop.permute.xlu0 %2001
        %2003 = vrot.lane.b32.xlu0 %v1382, 32
        %v2004 = vpop.permute.xlu0 %2003
        %2005 = vrot.lane.b32.xlu0 %v1387, 32
        %v2006 = vpop.permute.xlu0 %2005
        %2007 = vrot.lane.b32.xlu0 %v1390, 32
        %v2008 = vpop.permute.xlu0 %2007
        %2009 = vrot.lane.b32.xlu0 %v1395, 32
        %v2010 = vpop.permute.xlu0 %2009
        %2011 = vrot.lane.b32.xlu0 %v1398, 32
        %v2012 = vpop.permute.xlu0 %2011
        %2029 = vrot.lane.b32.xlu0 %v1665, 64
        %v2030 = vpop.permute.xlu0 %2029
        %2031 = vrot.lane.b32.xlu0 %v1668, 64
        %v2032 = vpop.permute.xlu0 %2031
        %2033 = vrot.lane.b32.xlu0 %v1673, 64
        %v2034 = vpop.permute.xlu0 %2033
        %2035 = vrot.lane.b32.xlu0 %v1676, 64
        %v2036 = vpop.permute.xlu0 %2035
        %2037 = vrot.lane.b32.xlu0 %v1681, 64
        %v2038 = vpop.permute.xlu0 %2037
        %2039 = vrot.lane.b32.xlu0 %v1684, 64
        %v2040 = vpop.permute.xlu0 %2039
        %2041 = vrot.lane.b32.xlu0 %v1689, 64
        %v2042 = vpop.permute.xlu0 %2041
        %2043 = vrot.lane.b32.xlu0 %v1692, 64
        %v2044 = vpop.permute.xlu0 %2043
        %2061 = vrot.lane.b32.xlu0 %v1959, 96
        %v2062 = vpop.permute.xlu0 %2061
        %2063 = vrot.lane.b32.xlu0 %v1962, 96
        %v2064 = vpop.permute.xlu0 %2063
        %2065 = vrot.lane.b32.xlu0 %v1967, 96
        %v2066 = vpop.permute.xlu0 %2065
        %2067 = vrot.lane.b32.xlu0 %v1970, 96
        %v2068 = vpop.permute.xlu0 %2067
        %2069 = vrot.lane.b32.xlu0 %v1975, 96
        %v2070 = vpop.permute.xlu0 %2069
        %2071 = vrot.lane.b32.xlu0 %v1978, 96
        %v2072 = vpop.permute.xlu0 %2071
        %2073 = vrot.lane.b32.xlu0 %v1983, 96
        %v2074 = vpop.permute.xlu0 %2073
        %2075 = vrot.lane.b32.xlu0 %v1986, 96
        %v2076 = vpop.permute.xlu0 %2075
        %v2085 = vsel %vm827, %v1065, %v1998
        %v2086 = vsel %vm827, %v1068, %v2000
        %v2087 = vsel %vm827, %v1073, %v2002
        %v2088 = vsel %vm827, %v1076, %v2004
        %v2089 = vsel %vm827, %v1081, %v2006
        %v2090 = vsel %vm827, %v1084, %v2008
        %v2091 = vsel %vm827, %v1089, %v2010
        %v2092 = vsel %vm827, %v1092, %v2012
        %v2093 = vsel %vm925, %v2085, %v2030
        %v2094 = vsel %vm925, %v2086, %v2032
        %v2095 = vsel %vm925, %v2087, %v2034
        %v2096 = vsel %vm925, %v2088, %v2036
        %v2097 = vsel %vm925, %v2089, %v2038
        %v2098 = vsel %vm925, %v2090, %v2040
        %v2099 = vsel %vm925, %v2091, %v2042
        %v2100 = vsel %vm925, %v2092, %v2044
        %vm2101 = vcmask 785408
        %v2102 = vsel %vm2101, %v2093, %v2062
        %v2103 = vsel %vm2101, %v2094, %v2064
        %v2104 = vsel %vm2101, %v2095, %v2066
        %v2105 = vsel %vm2101, %v2096, %v2068
        %v2106 = vsel %vm2101, %v2097, %v2070
        %v2107 = vsel %vm2101, %v2098, %v2072
        %v2108 = vsel %vm2101, %v2099, %v2074
        %v2109 = vsel %vm2101, %v2100, %v2076
        %v2110 = vpack.c.bf16 %v2103, %v2102
        %v2111 = vpack.c.bf16 %v2105, %v2104
        %v2112 = vpack.c.bf16 %v2107, %v2106
        %v2113 = vpack.c.bf16 %v2109, %v2108
        %v2114 = vld [vmem:[#allocation8] sm:$0xf]
        %v2115 = vld [vmem:[#allocation8 + $0x4] sm:$0xf]
        %v2116 = vld [vmem:[#allocation8 + $0x8] sm:$0xf]
        %v2117 = vld [vmem:[#allocation8 + $0xc] sm:$0xf]
        %v2118 = vld [vmem:[#allocation8 + $0x10] sm:$0xf]
        %v2119 = vld [vmem:[#allocation8 + $0x14] sm:$0xf]
        %v2120 = vld [vmem:[#allocation8 + $0x18] sm:$0xf]
        %v2121 = vld [vmem:[#allocation8 + $0x1c] sm:$0xf]
        %v2122 = vld [vmem:[#allocation8 + $0x20] sm:$0xf]
        %v2123 = vld [vmem:[#allocation8 + $0x24] sm:$0xf]
        %v2124 = vld [vmem:[#allocation8 + $0x28] sm:$0xf]
        %v2125 = vld [vmem:[#allocation8 + $0x2c] sm:$0xf]
        %v2126 = vld [vmem:[#allocation8 + $0x30] sm:$0xf]
        %v2127 = vld [vmem:[#allocation8 + $0x34] sm:$0xf]
        %v2128 = vld [vmem:[#allocation8 + $0x38] sm:$0xf]
        %v2129 = vld [vmem:[#allocation8 + $0x3c] sm:$0xf]
        %v2130 = vld [vmem:[%s4] sm:$0x1]
        %v2132 = vlaneseq
        %v2133 = vshrl.u32 %v2132, 7
        %v2134 = vsub.s32 0, %v2133
        %v2135 = vrot.slane %v2130, %v2134
        %v2153 = vunpack.c.l.b16 %v2114
        %v2154 = vunpack.c.l.b16 %v2115
        %v2155 = vunpack.c.l.b16 %v2116
        %v2156 = vunpack.c.l.b16 %v2117
        %v2157 = vunpack.c.l.b16 %v2118
        %v2158 = vunpack.c.l.b16 %v2119
        %v2159 = vunpack.c.l.b16 %v2120
        %v2160 = vunpack.c.l.b16 %v2121
        %v2161 = vunpack.c.l.b16 %v2122
        %v2162 = vunpack.c.l.b16 %v2123
        %v2163 = vunpack.c.l.b16 %v2124
        %v2164 = vunpack.c.l.b16 %v2125
        %v2165 = vunpack.c.l.b16 %v2126
        %v2166 = vunpack.c.l.b16 %v2127
        %v2167 = vunpack.c.l.b16 %v2128
        %v2168 = vunpack.c.l.b16 %v2129
        %v2169 = vpack.c.b16 %v2154, %v2153
        %v2170 = vpack.c.b16 %v2156, %v2155
        %v2171 = vpack.c.b16 %v2158, %v2157
        %v2172 = vpack.c.b16 %v2160, %v2159
        %v2173 = vpack.c.b16 %v2162, %v2161
        %v2174 = vpack.c.b16 %v2164, %v2163
        %v2175 = vpack.c.b16 %v2166, %v2165
        %v2176 = vpack.c.b16 %v2168, %v2167
        %2185 = vmatprep.subr.bf16.mxu0 0
        %2186 = vmatpush1.bf16.xpose.msra.mxu0 %v2169
        %2187 = vmatprep.subr.bf16.mxu0 0
        %2188 = vmatpush1.bf16.xpose.msra.mxu0 %v2170
        %2189 = vmatprep.subr.bf16.mxu0 0
        %2190 = vmatpush1.bf16.xpose.msra.mxu0 %v2171
        %2191 = vmatprep.subr.bf16.mxu0 0
        %2192 = vmatpush1.bf16.xpose.msra.mxu0 %v2172
        %2193 = vmatprep.subr.bf16.mxu0 0
        %2194 = vmatpush1.bf16.xpose.msra.mxu0 %v2173
        %2195 = vmatprep.subr.bf16.mxu0 0
        %2196 = vmatpush1.bf16.xpose.msra.mxu0 %v2174
        %2197 = vmatprep.subr.bf16.mxu0 0
        %2198 = vmatpush1.bf16.xpose.msra.mxu0 %v2175
        %2199 = vmatprep.subr.bf16.mxu0 0
        %2200 = vmatpush1.bf16.xpose.msra.mxu0 %v2176
        %2201 = vmatprep.subr.bf16.mxu0 0
        %2202 = vmatpush1.bf16.xpose.msra.mxu0 0
        %2203 = vmatprep.subr.bf16.mxu0 0
        %2204 = vmatpush1.bf16.xpose.msra.mxu0 0
        %2205 = vmatprep.subr.bf16.mxu0 0
        %2206 = vmatpush1.bf16.xpose.msra.mxu0 0
        %2207 = vmatprep.subr.bf16.mxu0 0
        %2208 = vmatpush1.bf16.xpose.msra.mxu0 0
        %2209 = vmatprep.subr.bf16.mxu0 0
        %2210 = vmatpush1.bf16.xpose.msra.mxu0 0
        %2211 = vmatprep.subr.bf16.mxu0 0
        %2212 = vmatpush1.bf16.xpose.msra.mxu0 0
        %2213 = vmatprep.subr.bf16.mxu0 0
        %2214 = vmatpush1.bf16.xpose.msra.mxu0 0
        %2215 = vmatprep.subr.bf16.mxu0 0
        %2216 = vmatpush1.bf16.xpose.msra.mxu0 0
        %2217 = vmatprep.mubr.bf16.mxu0 0
        %2218 = vmatmul.mubr.bf16.gmra.mrb[0].mxu0 %v2110
        %v2219 = vpop.f32.mrb[0].mxu0
        %v2220 = vadd.f32 %v2135, %v2219
        %v2221 = vpop.f32.mrb[0].mxu0
        %v2222 = vpop.f32.mrb[0].mxu0
        %v2223 = vadd.f32 %v2135, %v2222
        %v2224 = vpop.f32.mrb[0].mxu0
        %2225 = vmatprep.mubr.bf16.mxu0 0
        %2226 = vmatmul.mubr.bf16.gmra.mrb[0].mxu0 %v2111
        %v2227 = vpop.f32.mrb[0].mxu0
        %v2228 = vadd.f32 %v2135, %v2227
        %v2229 = vpop.f32.mrb[0].mxu0
        %v2230 = vpop.f32.mrb[0].mxu0
        %v2231 = vadd.f32 %v2135, %v2230
        %v2232 = vpop.f32.mrb[0].mxu0
        %2233 = vmatprep.mubr.bf16.mxu0 0
        %2234 = vmatmul.mubr.bf16.gmra.mrb[0].mxu0 %v2112
        %v2235 = vpop.f32.mrb[0].mxu0
        %v2236 = vadd.f32 %v2135, %v2235
        %v2237 = vpop.f32.mrb[0].mxu0
        %v2238 = vpop.f32.mrb[0].mxu0
        %v2239 = vadd.f32 %v2135, %v2238
        %v2240 = vpop.f32.mrb[0].mxu0
        %2241 = vmatprep.mubr.bf16.mxu0 0
        %2242 = vmatmul.mubr.bf16.gmra.mrb[0].mxu0 %v2113
        %v2243 = vpop.f32.mrb[0].mxu0
        %v2244 = vadd.f32 %v2135, %v2243
        %v2245 = vpop.f32.mrb[0].mxu0
        %v2246 = vpop.f32.mrb[0].mxu0
        %v2247 = vadd.f32 %v2135, %v2246
        %v2248 = vpop.f32.mrb[0].mxu0
        %2249 = vdwg.mxu0
        %2250 = vst [vmem:[%s286] sm:$0xff] %v2220
        %2251 = vst [vmem:[%s286 + $0x8] sm:$0xff] %v2223
        %2252 = vst [vmem:[%s286 + $0x10] sm:$0xff] %v2228
        %2253 = vst [vmem:[%s286 + $0x18] sm:$0xff] %v2231
        %2254 = vst [vmem:[%s286 + $0x20] sm:$0xff] %v2236
        %2255 = vst [vmem:[%s286 + $0x28] sm:$0xff] %v2239
        %2256 = vst [vmem:[%s286 + $0x30] sm:$0xff] %v2244
        %2257 = vst [vmem:[%s286 + $0x38] sm:$0xff] %v2247
        %s2258 = sand.u32 %s142, 1
        %s2259 = scalar_lea.sflag [#allocation4], %s2258
        %s2260 = sand.u32 %s142, 1
        %s2261 = smul.addr %s2260, 64
        %s2262 = scalar_lea.vmem [#allocation10], %s2261
        // Predicated region
        $region57: #{tpu_custom_call.1} parent=39 // pred_check
          %p2263 = pneg %p152
        $region58: #{tpu_custom_call.1} parent=39 // pred_check_branch
          %2265 = sbr.rel (%p2263) target = $region60
        $region59: #{tpu_custom_call.1} parent=39 // pred_region
          %s2267 = ssub.s32 1024, 1024
          %2268 = vsyncadd %s2259, %s2267
          %s2269 = smul.addr %s24, 8
          %s2270 = smul.addr %s2269, 128
          %s2271 = scalar_lea.hbm %s5, %s2270
          %s2272 = sshll.u32 %s2262, 4
          %s2273 = int_to_ptr.vmem [resolvable:$true] %s2272
          %2278 = dma.vmem_to_hbm [thread:$0]  %s2273, 1024, %s2271, %s2259, 128, 128, 8
        $region60: #{tpu_custom_call.1} parent=39 // pred_fallthru
          _
      $region40: #{tpu_custom_call.1} parent=5 // pred_fallthru
        _
      %p2279 = scmp.le.s32.totalorder 2, %s19
      // Predicated region
      $region61: #{tpu_custom_call.1} parent=5 // pred_check
        %p2280 = pneg %p2279
      $region62: #{tpu_custom_call.1} parent=5 // pred_check_branch
        %2282 = sbr.rel (%p2280) target = $region64
      $region63: #{tpu_custom_call.1} parent=5 // pred_region
        %s2283 = ssub.s32 %s19, 2
        // Predicated region
        $region65: #{tpu_custom_call.1} parent=63 // pred_check
          %p2284 = pneg %p158
        $region66: #{tpu_custom_call.1} parent=63 // pred_check_branch
          %2286 = sbr.rel (%p2284) target = $region68
        $region67: #{tpu_custom_call.1} parent=63 // pred_region
          %s2287 = sand.u32 %s143, 1
          %s2288 = scalar_lea.sflag [#allocation4], %s2287
          %s2289 = sand.u32 %s143, 1
          %s2290 = smul.addr %s2289, 64
          %s2291 = scalar_lea.vmem [#allocation10], %s2290
          %2292 = dma.done %s2288, 1024
        $region68: #{tpu_custom_call.1} parent=63 // pred_fallthru
          _
      $region64: #{tpu_custom_call.1} parent=5 // pred_fallthru
        _
    $region6: #{tpu_custom_call.1} parent=1 // loop_footer
      %s23 = sadd.s32 1, %s19
    $region7: #{tpu_custom_call.1} parent=1 // loop_footer_branch
      %18 = sbr.rel target = $region3
    $region8: #{tpu_custom_call.1} parent=1 // loop_exit
      _
    %2293 = vsyncpa [#allocation3], 1
    %s2294 = scalar_lea.sflag [#allocation3], 1
    %2295 = vsyncpa %s2294, 1
    %2296 = vsyncpa [#allocation6], 1
    %2297 = vsyncpa [#allocation9], 1
    %2298 = vsyncpa [#allocation4], 1
    %s2299 = scalar_lea.sflag [#allocation4], 1
    %2300 = vsyncpa %s2299, 1

</llo_original>
